<compile_context>
chip_gen: v7x
topology: tpu7x:2x2x1
jax: 0.10.0
libtpu: 0.0.40
codegen_flags: <defaults>
</compile_context>

<pallas_src>
import functools
import math

import jax
import jax.numpy as jnp
from jax.experimental import pallas as pl
from jax.experimental.pallas import tpu as pltpu


def _round_up(x, m):
    return (x + m - 1) // m * m


def _propagate_kernel(cnt_ref, idx_ref, deg_dst_ref, a_ref, y_src_ref,
                      y_dst_ref, x_dst_ref, o_ref, *, alp, lam):
    # cnt_ref : SMEM (n_i,)        number of nonzero src tiles per dst tile
    # idx_ref : SMEM (n_i, max_k)  src-tile index list (also used by index_maps)
    i = pl.program_id(0)
    k = pl.program_id(1)

    @pl.when(k == 0)
    def _():
        o_ref[...] = jnp.zeros_like(o_ref)

    # Skip padded entries of the per-row block list (all-zero A blocks).
    @pl.when(k < cnt_ref[i])
    def _():
        # bf16 x bf16 -> f32 accumulate directly into the resident output block.
        o_ref[...] += jnp.dot(a_ref[...], y_src_ref[...],
                              preferred_element_type=jnp.float32)

    @pl.when(k == pl.num_programs(1) - 1)
    def _():
        d = lam * deg_dst_ref[...] + (1.0 - lam)          # (tm, 1)
        n_half = jax.lax.rsqrt(d)                         # d^{-1/2}  (EUP)
        n_one = n_half * n_half                           # d^{-1} without a divide
        o_ref[...] = ((1.0 - alp) * y_dst_ref[...]
                      + (alp * lam) * (n_half * o_ref[...])
                      + alp * (n_one * x_dst_ref[...]))


def propagate(adj, deg, Y, X, alp, lam, *, tm=256, tk=512):
    """Dense/block-sparse Pallas version of Propagate.forward.

    adj : (N, N) adj[dst, src] = edge weight w
    deg : (N,)   graph.ndata['deg']
    Y   : (N, F) feature under propagation (Z^(k))
    X   : (N, F) original feature (Z^(0))
    alp : python float, step size
    lam : python float, smoothing coefficient

    Tile notes: tm/tk are multiples of 128 (v5e MXU granule); tk defaults to a
    multiple of 256 (fills v6e/v7x MXU depth).  VMEM budget is computed below —
    on v7x (64 MiB physical) keep the per-step estimate under ~48 MiB.
    """
    alp = float(alp)
    lam = float(lam)
    N, F = Y.shape

    # --- tile clamping for small graphs (tm must divide tk, both | 128) ---
    Nr = _round_up(N, 128)
    tk = min(tk, Nr)
    tm = min(tm, tk)
    while tk % tm != 0:
        tm -= 128
    Np = _round_up(N, tk)                   # node dim padded (tm | tk | Np)
    Fp = _round_up(F, 128)                  # lane-dense feature dim

    n_i = Np // tm                          # dst tiles
    n_k = Np // tk                          # src tiles

    # --- pad A directly in bf16 (no f32 (Np,Np) temporary) ---
    adj_bf = jnp.asarray(adj, jnp.float32).astype(jnp.bfloat16)
    adj_p = jnp.zeros((Np, Np), jnp.bfloat16).at[:N, :N].set(adj_bf)

    # --- degree (pad with 1.0 so padded dst rows never hit rsqrt(0)) ---
    deg_f = jnp.asarray(deg, jnp.float32)
    deg_p = jnp.ones((Np, 1), jnp.float32).at[:N, 0].set(deg_f)

    # --- pre-scale Y by D_s^{-1/2} once; matmul RHS streamed as bf16 ---
    d = lam * deg_f + (1.0 - lam)
    n_half = jax.lax.rsqrt(d)
    Ys = (jnp.asarray(Y, jnp.float32) * n_half[:, None]).astype(jnp.bfloat16)
    Ys_p = jnp.zeros((Np, Fp), jnp.bfloat16).at[:N, :F].set(Ys)

    Y_p = jnp.zeros((Np, Fp), jnp.float32).at[:N, :F].set(jnp.asarray(Y, jnp.float32))
    X_p = jnp.zeros((Np, Fp), jnp.float32).at[:N, :F].set(jnp.asarray(X, jnp.float32))

    # --- block-sparse metadata: per dst-tile list of nonzero src tiles ---
    # (wrapper is eager here; max_blk must be a concrete int for the grid)
    blk = (adj_p.reshape(n_i, tm, n_k, tk) != 0).any(axis=(1, 3))     # (n_i, n_k)
    cnt = blk.sum(axis=1).astype(jnp.int32)                           # (n_i,)
    max_blk = max(int(jnp.max(cnt)), 1)
    order = jnp.argsort(~blk, axis=1)                                 # nonzero first, stable
    idx = order[:, :max_blk].astype(jnp.int32)                        # (n_i, max_blk)

    grid = (n_i, max_blk)

    # --- VMEM budget (double-buffered streams) -> vmem_limit_bytes ---
    est = (2 * tm * tk * 2            # A blocks (bf16)
           + 2 * tk * Fp * 2          # Y-src pre-scaled (bf16)
           + 2 * 2 * tm * Fp * 4      # Y-dst + X-dst (f32)
           + 2 * tm * Fp * 4          # output block (f32)
           + 4 * tm * 4)              # deg dst
    vmem_limit = int(min(max(1.5 * est + (2 << 20), 32 << 20), 100 << 20))

    kernel = functools.partial(_propagate_kernel, alp=alp, lam=lam)

    out = pl.pallas_call(
        kernel,
        out_shape=jax.ShapeDtypeStruct((Np, Fp), jnp.float32),
        grid_spec=pltpu.PrefetchScalarGridSpec(
            num_scalar_prefetch=2,        # cnt, idx land in SMEM
            grid=grid,
            in_specs=[
                pl.BlockSpec((tm, 1), lambda i, k, cnt, idx: (i, 0)),           # deg, dst rows
                pl.BlockSpec((tm, tk), lambda i, k, cnt, idx: (i, idx[i, k])),  # A tile (remapped k)
                pl.BlockSpec((tk, Fp), lambda i, k, cnt, idx: (idx[i, k], 0)),  # pre-scaled Y src (bf16)
                pl.BlockSpec((tm, Fp), lambda i, k, cnt, idx: (i, 0)),          # Y dst (epilogue)
                pl.BlockSpec((tm, Fp), lambda i, k, cnt, idx: (i, 0)),          # X dst (epilogue)
            ],
            out_specs=pl.BlockSpec((tm, Fp), lambda i, k, cnt, idx: (i, 0)),
        ),
        compiler_params=pltpu.CompilerParams(
            dimension_semantics=("parallel", "arbitrary"),
            vmem_limit_bytes=vmem_limit),
    )(cnt, idx, deg_p, adj_p, Ys_p, Y_p, X_p)

    return out[:N, :F]


def _reference(adj, deg, Y, X, alp, lam):
    d = lam * deg + (1.0 - lam)
    n_half = d ** -0.5
    n_one = d ** -1.0
    prop = n_half[:, None] * (adj @ (n_half[:, None] * Y))
    return (1.0 - alp) * Y + alp * lam * prop + alp * (n_one[:, None] * X)


if __name__ == "__main__":
    key = jax.random.PRNGKey(0)
    N, F = 256, 32                          # small synthetic graph: 256 nodes, 32-dim feats
    k_a, k_m, k_y, k_x = jax.random.split(key, 4)

    # deterministic sparse-ish weighted adjacency: random weights, ~10% density
    weights = jax.random.uniform(k_a, (N, N), dtype=jnp.float32)
    mask = (jax.random.uniform(k_m, (N, N)) < 0.1).astype(jnp.float32)
    adj = weights * mask                    # adj[dst, src] = edge weight
    deg = adj.sum(axis=1)                   # weighted in-degree (graph.ndata['deg'])

    Y = jax.random.normal(k_y, (N, F), dtype=jnp.float32)
    X = jax.random.normal(k_x, (N, F), dtype=jnp.float32)
    alp = 0.5
    lam = 0.9

    out = propagate(adj, deg, Y, X, alp, lam)
    jax.block_until_ready(out)

    ref = _reference(adj, deg, Y, X, alp, lam)
    assert out.shape == (N, F)
    # A and the pre-scaled Y matmul operand are bf16 (f32 accumulation) ->
    # slightly looser tolerance vs the pure-f32 reference.
    assert jnp.allclose(out, ref, atol=2e-2, rtol=2e-2), "mismatch vs reference"

    print("KERNEL_OK")
</pallas_src>

<mosaic_0001>
module attributes {stable_mosaic.version = 11 : i64} {
  func.func @_propagate_kernel(%arg0: i32, %arg1: i32, %arg2: memref<1xi32, #tpu.memory_space<smem>>, %arg3: memref<1x1xi32, #tpu.memory_space<smem>>, %arg4: memref<256x1xf32, #tpu.memory_space<vmem>>, %arg5: memref<256x256xbf16, #tpu.memory_space<vmem>>, %arg6: memref<256x128xbf16, #tpu.memory_space<vmem>>, %arg7: memref<256x128xf32, #tpu.memory_space<vmem>>, %arg8: memref<256x128xf32, #tpu.memory_space<vmem>>, %arg9: memref<256x128xf32, #tpu.memory_space<vmem>>) attributes {dimension_semantics = [#tpu.dimension_semantics<parallel>, #tpu.dimension_semantics<arbitrary>], iteration_bounds = array<i64: 1, 1>, scalar_prefetch = 2 : i64, scratch_operands = 0 : i64, tpu.core_type = #tpu.core_type<tc>, window_params = [{transform_indices = @transform_0, window_bounds = array<i64: 256, 1>}, {transform_indices = @transform_1, window_bounds = array<i64: 256, 256>}, {transform_indices = @transform_2, window_bounds = array<i64: 256, 128>}, {transform_indices = @transform_3, window_bounds = array<i64: 256, 128>}, {transform_indices = @transform_4, window_bounds = array<i64: 256, 128>}, {transform_indices = @transform_5, window_bounds = array<i64: 256, 128>}]} {
    %c0_i32 = arith.constant 0 : i32
    %0 = arith.cmpi eq, %arg1, %c0_i32 : i32
    %1 = arith.extui %0 : i1 to i32
    %c0_i32_0 = arith.constant 0 : i32
    %2 = arith.cmpi ne, %1, %c0_i32_0 : i32
    scf.if %2 {
      %cst = arith.constant 0.000000e+00 : f32
      %11 = vector.broadcast %cst : f32 to vector<256x128xf32>
      %c0 = arith.constant 0 : index
      %c0_4 = arith.constant 0 : index
      %12 = vector.load %arg9[%c0, %c0_4] : memref<256x128xf32, #tpu.memory_space<vmem>>, vector<256x128xf32>
      tpu.vector_store %arg9[%c0, %c0_4], %11 {strides = array<i32>} : memref<256x128xf32, #tpu.memory_space<vmem>>, vector<256x128xf32>,
    } else {
    }
    %3 = arith.index_cast %arg0 : i32 to index
    %4 = memref.load %arg2[%3] : memref<1xi32, #tpu.memory_space<smem>>
    %5 = arith.cmpi slt, %arg1, %4 : i32
    %6 = arith.extui %5 : i1 to i32
    %c0_i32_1 = arith.constant 0 : i32
    %7 = arith.cmpi ne, %6, %c0_i32_1 : i32
    scf.if %7 {
      %c0 = arith.constant 0 : index
      %c0_4 = arith.constant 0 : index
      %11 = vector.load %arg9[%c0, %c0_4] : memref<256x128xf32, #tpu.memory_space<vmem>>, vector<256x128xf32>
      %c0_5 = arith.constant 0 : index
      %c0_6 = arith.constant 0 : index
      %12 = vector.load %arg5[%c0_5, %c0_6] : memref<256x256xbf16, #tpu.memory_space<vmem>>, vector<256x256xbf16>
      %c0_7 = arith.constant 0 : index
      %c0_8 = arith.constant 0 : index
      %13 = vector.load %arg6[%c0_7, %c0_8] : memref<256x128xbf16, #tpu.memory_space<vmem>>, vector<256x128xbf16>
      %cst = arith.constant dense<0.000000e+00> : vector<256x128xf32>
      %14 = tpu.matmul %12, %13, %cst {dimension_numbers = #tpu.dot_dimension_numbers<[1], [0], [0], [1], [0, 0, 1, 1], [], []>} : vector<256x256xbf16>, vector<256x128xbf16>, vector<256x128xf32> -> vector<256x128xf32>
      %15 = arith.addf %11, %14 : vector<256x128xf32>
      %c0_9 = arith.constant 0 : index
      %c0_10 = arith.constant 0 : index
      %16 = vector.load %arg9[%c0_9, %c0_10] : memref<256x128xf32, #tpu.memory_space<vmem>>, vector<256x128xf32>
      tpu.vector_store %arg9[%c0_9, %c0_10], %15 {strides = array<i32>} : memref<256x128xf32, #tpu.memory_space<vmem>>, vector<256x128xf32>,
    } else {
    }
    %c0_i32_2 = arith.constant 0 : i32
    %8 = arith.cmpi eq, %arg1, %c0_i32_2 : i32
    %9 = arith.extui %8 : i1 to i32
    %c0_i32_3 = arith.constant 0 : i32
    %10 = arith.cmpi ne, %9, %c0_i32_3 : i32
    scf.if %10 {
      %c0 = arith.constant 0 : index
      %c0_4 = arith.constant 0 : index
      %11 = vector.load %arg4[%c0, %c0_4] : memref<256x1xf32, #tpu.memory_space<vmem>>, vector<256x1xf32>
      %cst = arith.constant 0.899999976 : f32
      %12 = vector.broadcast %cst : f32 to vector<256x1xf32>
      %13 = arith.mulf %12, %11 : vector<256x1xf32>
      %cst_5 = arith.constant 1.000000e-01 : f32
      %14 = vector.broadcast %cst_5 : f32 to vector<256x1xf32>
      %15 = arith.addf %13, %14 : vector<256x1xf32>
      %16 = math.rsqrt %15 : vector<256x1xf32>
      %17 = arith.mulf %16, %16 : vector<256x1xf32>
      %c0_6 = arith.constant 0 : index
      %c0_7 = arith.constant 0 : index
      %18 = vector.load %arg7[%c0_6, %c0_7] : memref<256x128xf32, #tpu.memory_space<vmem>>, vector<256x128xf32>
      %cst_8 = arith.constant 5.000000e-01 : f32
      %19 = vector.broadcast %cst_8 : f32 to vector<256x128xf32>
      %20 = arith.mulf %19, %18 : vector<256x128xf32>
      %c0_9 = arith.constant 0 : index
      %c0_10 = arith.constant 0 : index
      %21 = vector.load %arg9[%c0_9, %c0_10] : memref<256x128xf32, #tpu.memory_space<vmem>>, vector<256x128xf32>
      %22 = vector.broadcast %16 : vector<256x1xf32> to vector<256x128xf32>
      %23 = arith.mulf %22, %21 : vector<256x128xf32>
      %cst_11 = arith.constant 4.500000e-01 : f32
      %24 = vector.broadcast %cst_11 : f32 to vector<256x128xf32>
      %25 = arith.mulf %24, %23 : vector<256x128xf32>
      %26 = arith.addf %20, %25 : vector<256x128xf32>
      %c0_12 = arith.constant 0 : index
      %c0_13 = arith.constant 0 : index
      %27 = vector.load %arg8[%c0_12, %c0_13] : memref<256x128xf32, #tpu.memory_space<vmem>>, vector<256x128xf32>
      %28 = vector.broadcast %17 : vector<256x1xf32> to vector<256x128xf32>
      %29 = arith.mulf %28, %27 : vector<256x128xf32>
      %cst_14 = arith.constant 5.000000e-01 : f32
      %30 = vector.broadcast %cst_14 : f32 to vector<256x128xf32>
      %31 = arith.mulf %30, %29 : vector<256x128xf32>
      %32 = arith.addf %26, %31 : vector<256x128xf32>
      %c0_15 = arith.constant 0 : index
      %c0_16 = arith.constant 0 : index
      %33 = vector.load %arg9[%c0_15, %c0_16] : memref<256x128xf32, #tpu.memory_space<vmem>>, vector<256x128xf32>
      tpu.vector_store %arg9[%c0_15, %c0_16], %32 {strides = array<i32>} : memref<256x128xf32, #tpu.memory_space<vmem>>, vector<256x128xf32>,
    } else {
    }
    return
  }
  func.func @transform_0(%arg0: i32, %arg1: i32, %arg2: memref<1xi32, #tpu.memory_space<smem>>, %arg3: memref<1x1xi32, #tpu.memory_space<smem>>) -> (i32, i32) {
    %c0_i32 = arith.constant 0 : i32
    %c0_i32_0 = arith.constant 0 : i32
    return %arg0, %c0_i32 : i32, i32
  }
  func.func @transform_1(%arg0: i32, %arg1: i32, %arg2: memref<1xi32, #tpu.memory_space<smem>>, %arg3: memref<1x1xi32, #tpu.memory_space<smem>>) -> (i32, i32) {
    %0 = arith.index_cast %arg0 : i32 to index
    %1 = arith.index_cast %arg1 : i32 to index
    %2 = memref.load %arg3[%0, %1] : memref<1x1xi32, #tpu.memory_space<smem>>
    %c0_i32 = arith.constant 0 : i32
    return %arg0, %2 : i32, i32
  }
  func.func @transform_2(%arg0: i32, %arg1: i32, %arg2: memref<1xi32, #tpu.memory_space<smem>>, %arg3: memref<1x1xi32, #tpu.memory_space<smem>>) -> (i32, i32) {
    %0 = arith.index_cast %arg0 : i32 to index
    %1 = arith.index_cast %arg1 : i32 to index
    %2 = memref.load %arg3[%0, %1] : memref<1x1xi32, #tpu.memory_space<smem>>
    %c0_i32 = arith.constant 0 : i32
    %c0_i32_0 = arith.constant 0 : i32
    return %2, %c0_i32 : i32, i32
  }
  func.func @transform_3(%arg0: i32, %arg1: i32, %arg2: memref<1xi32, #tpu.memory_space<smem>>, %arg3: memref<1x1xi32, #tpu.memory_space<smem>>) -> (i32, i32) {
    %c0_i32 = arith.constant 0 : i32
    %c0_i32_0 = arith.constant 0 : i32
    return %arg0, %c0_i32 : i32, i32
  }
  func.func @transform_4(%arg0: i32, %arg1: i32, %arg2: memref<1xi32, #tpu.memory_space<smem>>, %arg3: memref<1x1xi32, #tpu.memory_space<smem>>) -> (i32, i32) {
    %c0_i32 = arith.constant 0 : i32
    %c0_i32_0 = arith.constant 0 : i32
    return %arg0, %c0_i32 : i32, i32
  }
  func.func @transform_5(%arg0: i32, %arg1: i32, %arg2: memref<1xi32, #tpu.memory_space<smem>>, %arg3: memref<1x1xi32, #tpu.memory_space<smem>>) -> (i32, i32) {
    %c0_i32 = arith.constant 0 : i32
    %c0_i32_0 = arith.constant 0 : i32
    return %arg0, %c0_i32 : i32, i32
  }
}

</mosaic_0001>

<llo_original>
// kernel: tpu_custom_call.1
$region0: #{tpu_custom_call.1}
  #allocation0 [shape = 'u32[]', space=smem, size = 0x4, offset = 0x4, fixed_abs, tag = 'smem constant byte address 0x4 - core index']
  #allocation1 [shape = 'u32[144,128]{1,0:T(1,128)}', space=vmem, size = 0x12000, scoped, tag = 'internal scratch']
  #allocation2 [shape = 's32[1]{0}', space=sflag, size = 0x4, scoped, tag = 'scoped memory for tpu_custom_call.1']
  #allocation3 [shape = 's32[1]{0:T(128)S(6)}', space=smem, size = 0x200, scoped, tag = 'prefetched SMEM operand 0']
  #allocation4 [shape = 's32[1,1]{1,0:T(1,128)S(6)}', space=smem, size = 0x200, scoped, tag = 'prefetched SMEM operand 1']
  %s0 = inlined_call_operand.<no memory space> [shape: s32[1], index: 0, kind: input, shape index: {}]
  %s1 = inlined_call_operand.<no memory space> [shape: s32[1,1], index: 1, kind: input, shape index: {}]
  %s2 = inlined_call_operand.vmem [shape: f32[256,1], index: 2, kind: input, shape index: {}]
  %s3 = inlined_call_operand.vmem [shape: bf16[256,256], index: 3, kind: input, shape index: {}]
  %s4 = inlined_call_operand.hbm [shape: bf16[256,128], index: 4, kind: input, shape index: {}]
  %s5 = inlined_call_operand.hbm [shape: f32[256,128], index: 5, kind: input, shape index: {}]
  %s6 = inlined_call_operand.hbm [shape: f32[256,128], index: 6, kind: input, shape index: {}]
  %s7 = inlined_call_operand.hbm [shape: f32[256,128], index: 7, kind: output, shape index: {}]
  %s8 = sld [smem:[#allocation0]]
  $region54: #{tpu_custom_call.1} parent=0
    _
  %s10 = ssub.s32 1, %s8
  %s11 = scalar_select 0, %s10, %s8
  %12 = sst [smem:[#allocation3]] %s0
  %13 = sst [smem:[#allocation4]] %s1
  $region1: #{tpu_custom_call.1} parent=0
    #allocation5 [shape = 'u8[65536]{0}', space=vmem, size = 0x10000, scoped, tag = 'input window, operand 4, single buffered']
    #allocation6 [shape = 's32[1]{0}', space=sflag, size = 0x4, scoped, tag = 'scoped memory for tpu_custom_call.1']
    #allocation7 [shape = 's32[1]{0}', space=sflag, size = 0x4, scoped, tag = 'scoped memory for tpu_custom_call.1']
    #allocation8 [shape = 'u8[131072]{0}', space=vmem, size = 0x20000, scoped, tag = 'input window, operand 5, single buffered']
    #allocation9 [shape = 's32[1]{0}', space=sflag, size = 0x4, scoped, tag = 'scoped memory for tpu_custom_call.1']
    #allocation10 [shape = 'u8[131072]{0}', space=vmem, size = 0x20000, scoped, tag = 'input window, operand 6, single buffered']
    #allocation11 [shape = 'u8[131072]{0}', space=vmem, size = 0x20000, scoped, tag = 'output window, operand 0, single buffered']
    %14 = vsyncpa [#allocation6], 0
    %15 = vsyncpa [#allocation9], 0
    %16 = vsyncpa [#allocation7], 0
    // Predicated region
    $region2: #{tpu_custom_call.1} parent=1 // pred_check
      _
    $region3: #{tpu_custom_call.1} parent=1 // pred_check_branch
      %18 = sbr.rel (0) target = $region5
    $region4: #{tpu_custom_call.1} parent=1 // pred_region
      _
    $region5: #{tpu_custom_call.1} parent=1 // pred_fallthru
      _
    // Predicated region
    $region6: #{tpu_custom_call.1} parent=1 // pred_check
      _
    $region7: #{tpu_custom_call.1} parent=1 // pred_check_branch
      %20 = sbr.rel (0) target = $region9
    $region8: #{tpu_custom_call.1} parent=1 // pred_region
      %s21 = sadd.s32 0, 0
      %s22 = smul.u32 %s21, 128
      %s23 = sadd.s32 %s22, 0
      %s24 = sld [smem:[#allocation4 + %s23]]
      %s25 = smul.u32 2, %s24
      %p26 = scmp.lt.s32.totalorder %s25, 1
      %s27 = scalar_select %p26, %s25, 1
      %s28 = smul.addr %s27, 4
      %s29 = scalar_lea.vmem %s3, %s28
      %s30 = sadd.s32 0, 0
      %s31 = smul.u32 %s30, 128
      %s32 = sadd.s32 %s31, 0
      %s33 = sld [smem:[#allocation4 + %s32]]
      %s34 = smul.u32 2, %s33
    $region9: #{tpu_custom_call.1} parent=1 // pred_fallthru
      _
    // Predicated region
    $region10: #{tpu_custom_call.1} parent=1 // pred_check
      _
    $region11: #{tpu_custom_call.1} parent=1 // pred_check_branch
      %36 = sbr.rel (0) target = $region13
    $region12: #{tpu_custom_call.1} parent=1 // pred_region
      %s37 = sadd.s32 0, 0
      %s38 = smul.u32 %s37, 128
      %s39 = sadd.s32 %s38, 0
      %s40 = sld [smem:[#allocation4 + %s39]]
      %s41 = smul.u32 32, %s40
      %s43 = ssub.s32 2048, 2048
      %44 = vsyncadd [#allocation6], %s43
      %s45 = smul.addr %s41, 64
      %s46 = scalar_lea.hbm %s4, %s45
      %s47 = sshll.u32 [#allocation5], 4
      %s48 = int_to_ptr.vmem [resolvable:$true] %s47
      %53 = dma.hbm_to_vmem [thread:$0]  %s46, 2048, %s48, [#allocation6], 64, 64, 4
    $region13: #{tpu_custom_call.1} parent=1 // pred_fallthru
      _
    // Predicated region
    $region14: #{tpu_custom_call.1} parent=1 // pred_check
      _
    $region15: #{tpu_custom_call.1} parent=1 // pred_check_branch
      %55 = sbr.rel (0) target = $region17
    $region16: #{tpu_custom_call.1} parent=1 // pred_region
      %s57 = ssub.s32 4096, 4096
      %58 = vsyncadd [#allocation9], %s57
      %s59 = sshll.u32 [#allocation8], 4
      %s60 = int_to_ptr.vmem [resolvable:$true] %s59
      %65 = dma.hbm_to_vmem [thread:$0]  %s5, 4096, %s60, [#allocation9], 128, 128, 8
    $region17: #{tpu_custom_call.1} parent=1 // pred_fallthru
      _
    // Predicated region
    $region18: #{tpu_custom_call.1} parent=1 // pred_check
      _
    $region19: #{tpu_custom_call.1} parent=1 // pred_check_branch
      %67 = sbr.rel (0) target = $region21
    $region20: #{tpu_custom_call.1} parent=1 // pred_region
      %s69 = ssub.s32 4096, 4096
      %70 = vsyncadd [#allocation9], %s69
      %s71 = sshll.u32 [#allocation10], 4
      %s72 = int_to_ptr.vmem [resolvable:$true] %s71
      %77 = dma.hbm_to_vmem [thread:$0]  %s6, 4096, %s72, [#allocation9], 128, 128, 8
    $region21: #{tpu_custom_call.1} parent=1 // pred_fallthru
      _
    // Predicated region
    $region22: #{tpu_custom_call.1} parent=1 // pred_check
      _
    $region23: #{tpu_custom_call.1} parent=1 // pred_check_branch
      %79 = sbr.rel (0) target = $region25
    $region24: #{tpu_custom_call.1} parent=1 // pred_region
      %80 = dma.done [#allocation6], 2048
    $region25: #{tpu_custom_call.1} parent=1 // pred_fallthru
      _
    // Predicated region
    $region26: #{tpu_custom_call.1} parent=1 // pred_check
      _
    $region27: #{tpu_custom_call.1} parent=1 // pred_check_branch
      %82 = sbr.rel (0) target = $region29
    $region28: #{tpu_custom_call.1} parent=1 // pred_region
      %83 = dma.done [#allocation9], 4096
    $region29: #{tpu_custom_call.1} parent=1 // pred_fallthru
      _
    // Predicated region
    $region30: #{tpu_custom_call.1} parent=1 // pred_check
      _
    $region31: #{tpu_custom_call.1} parent=1 // pred_check_branch
      %85 = sbr.rel (0) target = $region33
    $region32: #{tpu_custom_call.1} parent=1 // pred_region
      %86 = dma.done [#allocation9], 4096
    $region33: #{tpu_custom_call.1} parent=1 // pred_fallthru
      _
    %s87 = sadd.s32 0, 0
    %s88 = smul.u32 %s87, 128
    %s89 = sadd.s32 %s88, 0
    %s90 = sld [smem:[#allocation4 + %s89]]
    %s91 = smul.u32 2, %s90
    %p92 = scmp.lt.s32.totalorder %s91, 1
    %s93 = scalar_select %p92, %s91, 1
    %s94 = smul.addr %s93, 4
    %s95 = scalar_lea.vmem %s3, %s94
    %s96 = sadd.s32 0, 0
    %s97 = smul.u32 %s96, 128
    %s98 = sadd.s32 %s97, 0
    %s99 = sld [smem:[#allocation4 + %s98]]
    %s100 = smul.u32 2, %s99
    %p101 = scmp.lt.s32.totalorder %s100, 1
    %s102 = scalar_select %p101, %s100, 1
    %s103 = smul.addr %s102, 4
    %s104 = scalar_lea.vmem %s3, %s103
    %s105 = sadd.s32 0, 0
    %s106 = smul.u32 %s105, 128
    %s107 = sadd.s32 %s106, 0
    %s108 = sld [smem:[#allocation4 + %s107]]
    %s109 = smul.u32 2, %s108
    %s110 = sadd.s32 0, 0
    %s111 = smul.u32 %s110, 128
    %s112 = sadd.s32 %s111, 0
    %s113 = sld [smem:[#allocation4 + %s112]]
    %s114 = smul.u32 32, %s113
    %p116 = scmp.eq.s32.totalorder 0, 0
    // Predicated region
    $region34: #{tpu_custom_call.1} parent=1 // pred_check
      %p117 = pneg %p116
    $region35: #{tpu_custom_call.1} parent=1 // pred_check_branch
      %119 = sbr.rel (%p117) target = $region37
    $region36: #{tpu_custom_call.1} parent=1 // pred_region
      %120 = vst [vmem:[#allocation11] sm:$0xff] 0.0
      %121 = vst [vmem:[#allocation11 + $0x8] sm:$0xff] 0.0
      %122 = vst [vmem:[#allocation11 + $0x10] sm:$0xff] 0.0
      %123 = vst [vmem:[#allocation11 + $0x18] sm:$0xff] 0.0
      %124 = vst [vmem:[#allocation11 + $0x20] sm:$0xff] 0.0
      %125 = vst [vmem:[#allocation11 + $0x28] sm:$0xff] 0.0
      %126 = vst [vmem:[#allocation11 + $0x30] sm:$0xff] 0.0
      %127 = vst [vmem:[#allocation11 + $0x38] sm:$0xff] 0.0
      %128 = vst [vmem:[#allocation11 + $0x40] sm:$0xff] 0.0
      %129 = vst [vmem:[#allocation11 + $0x48] sm:$0xff] 0.0
      %130 = vst [vmem:[#allocation11 + $0x50] sm:$0xff] 0.0
      %131 = vst [vmem:[#allocation11 + $0x58] sm:$0xff] 0.0
      %132 = vst [vmem:[#allocation11 + $0x60] sm:$0xff] 0.0
      %133 = vst [vmem:[#allocation11 + $0x68] sm:$0xff] 0.0
      %134 = vst [vmem:[#allocation11 + $0x70] sm:$0xff] 0.0
      %135 = vst [vmem:[#allocation11 + $0x78] sm:$0xff] 0.0
      %136 = vst [vmem:[#allocation11 + $0x80] sm:$0xff] 0.0
      %137 = vst [vmem:[#allocation11 + $0x88] sm:$0xff] 0.0
      %138 = vst [vmem:[#allocation11 + $0x90] sm:$0xff] 0.0
      %139 = vst [vmem:[#allocation11 + $0x98] sm:$0xff] 0.0
      %140 = vst [vmem:[#allocation11 + $0xa0] sm:$0xff] 0.0
      %141 = vst [vmem:[#allocation11 + $0xa8] sm:$0xff] 0.0
      %142 = vst [vmem:[#allocation11 + $0xb0] sm:$0xff] 0.0
      %143 = vst [vmem:[#allocation11 + $0xb8] sm:$0xff] 0.0
      %144 = vst [vmem:[#allocation11 + $0xc0] sm:$0xff] 0.0
      %145 = vst [vmem:[#allocation11 + $0xc8] sm:$0xff] 0.0
      %146 = vst [vmem:[#allocation11 + $0xd0] sm:$0xff] 0.0
      %147 = vst [vmem:[#allocation11 + $0xd8] sm:$0xff] 0.0
      %148 = vst [vmem:[#allocation11 + $0xe0] sm:$0xff] 0.0
      %149 = vst [vmem:[#allocation11 + $0xe8] sm:$0xff] 0.0
      %150 = vst [vmem:[#allocation11 + $0xf0] sm:$0xff] 0.0
      %151 = vst [vmem:[#allocation11 + $0xf8] sm:$0xff] 0.0
    $region37: #{tpu_custom_call.1} parent=1 // pred_fallthru
      _
    %s152 = sld [smem:[#allocation3]]
    %p153 = scmp.lt.s32.totalorder 0, %s152
    // Predicated region
    $region38: #{tpu_custom_call.1} parent=1 // pred_check
      %p154 = pneg %p153
    $region39: #{tpu_custom_call.1} parent=1 // pred_check_branch
      %156 = sbr.rel (%p154) target = $region41
    $region40: #{tpu_custom_call.1} parent=1 // pred_region
      %v157 = vld [vmem:[#allocation11] sm:$0xff]
      %v158 = vld [vmem:[#allocation11 + $0x8] sm:$0xff]
      %v159 = vld [vmem:[#allocation11 + $0x10] sm:$0xff]
      %v160 = vld [vmem:[#allocation11 + $0x18] sm:$0xff]
      %v161 = vld [vmem:[#allocation11 + $0x20] sm:$0xff]
      %v162 = vld [vmem:[#allocation11 + $0x28] sm:$0xff]
      %v163 = vld [vmem:[#allocation11 + $0x30] sm:$0xff]
      %v164 = vld [vmem:[#allocation11 + $0x38] sm:$0xff]
      %v165 = vld [vmem:[#allocation11 + $0x40] sm:$0xff]
      %v166 = vld [vmem:[#allocation11 + $0x48] sm:$0xff]
      %v167 = vld [vmem:[#allocation11 + $0x50] sm:$0xff]
      %v168 = vld [vmem:[#allocation11 + $0x58] sm:$0xff]
      %v169 = vld [vmem:[#allocation11 + $0x60] sm:$0xff]
      %v170 = vld [vmem:[#allocation11 + $0x68] sm:$0xff]
      %v171 = vld [vmem:[#allocation11 + $0x70] sm:$0xff]
      %v172 = vld [vmem:[#allocation11 + $0x78] sm:$0xff]
      %v173 = vld [vmem:[#allocation11 + $0x80] sm:$0xff]
      %v174 = vld [vmem:[#allocation11 + $0x88] sm:$0xff]
      %v175 = vld [vmem:[#allocation11 + $0x90] sm:$0xff]
      %v176 = vld [vmem:[#allocation11 + $0x98] sm:$0xff]
      %v177 = vld [vmem:[#allocation11 + $0xa0] sm:$0xff]
      %v178 = vld [vmem:[#allocation11 + $0xa8] sm:$0xff]
      %v179 = vld [vmem:[#allocation11 + $0xb0] sm:$0xff]
      %v180 = vld [vmem:[#allocation11 + $0xb8] sm:$0xff]
      %v181 = vld [vmem:[#allocation11 + $0xc0] sm:$0xff]
      %v182 = vld [vmem:[#allocation11 + $0xc8] sm:$0xff]
      %v183 = vld [vmem:[#allocation11 + $0xd0] sm:$0xff]
      %v184 = vld [vmem:[#allocation11 + $0xd8] sm:$0xff]
      %v185 = vld [vmem:[#allocation11 + $0xe0] sm:$0xff]
      %v186 = vld [vmem:[#allocation11 + $0xe8] sm:$0xff]
      %v187 = vld [vmem:[#allocation11 + $0xf0] sm:$0xff]
      %v188 = vld [vmem:[#allocation11 + $0xf8] sm:$0xff]
      %v189 = vld [vmem:[%s104] sm:$0xff]
      %v190 = vld [vmem:[%s104 + $0x8] sm:$0xff]
      %v191 = vld [vmem:[%s104 + $0x10] sm:$0xff]
      %v192 = vld [vmem:[%s104 + $0x18] sm:$0xff]
      %v193 = vld [vmem:[%s104 + $0x20] sm:$0xff]
      %v194 = vld [vmem:[%s104 + $0x28] sm:$0xff]
      %v195 = vld [vmem:[%s104 + $0x30] sm:$0xff]
      %v196 = vld [vmem:[%s104 + $0x38] sm:$0xff]
      %v197 = vld [vmem:[%s104 + $0x40] sm:$0xff]
      %v198 = vld [vmem:[%s104 + $0x48] sm:$0xff]
      %v199 = vld [vmem:[%s104 + $0x50] sm:$0xff]
      %v200 = vld [vmem:[%s104 + $0x58] sm:$0xff]
      %v201 = vld [vmem:[%s104 + $0x60] sm:$0xff]
      %v202 = vld [vmem:[%s104 + $0x68] sm:$0xff]
      %v203 = vld [vmem:[%s104 + $0x70] sm:$0xff]
      %v204 = vld [vmem:[%s104 + $0x78] sm:$0xff]
      %v205 = vld [vmem:[%s104 + $0x80] sm:$0xff]
      %v206 = vld [vmem:[%s104 + $0x88] sm:$0xff]
      %v207 = vld [vmem:[%s104 + $0x90] sm:$0xff]
      %v208 = vld [vmem:[%s104 + $0x98] sm:$0xff]
      %v209 = vld [vmem:[%s104 + $0xa0] sm:$0xff]
      %v210 = vld [vmem:[%s104 + $0xa8] sm:$0xff]
      %v211 = vld [vmem:[%s104 + $0xb0] sm:$0xff]
      %v212 = vld [vmem:[%s104 + $0xb8] sm:$0xff]
      %v213 = vld [vmem:[%s104 + $0xc0] sm:$0xff]
      %v214 = vld [vmem:[%s104 + $0xc8] sm:$0xff]
      %v215 = vld [vmem:[%s104 + $0xd0] sm:$0xff]
      %v216 = vld [vmem:[%s104 + $0xd8] sm:$0xff]
      %v217 = vld [vmem:[%s104 + $0xe0] sm:$0xff]
      %v218 = vld [vmem:[%s104 + $0xe8] sm:$0xff]
      %v219 = vld [vmem:[%s104 + $0xf0] sm:$0xff]
      %v220 = vld [vmem:[%s104 + $0xf8] sm:$0xff]
      %v221 = vld [vmem:[#allocation5] sm:$0xf]
      %v222 = vld [vmem:[#allocation5 + $0x4] sm:$0xf]
      %v223 = vld [vmem:[#allocation5 + $0x8] sm:$0xf]
      %v224 = vld [vmem:[#allocation5 + $0xc] sm:$0xf]
      %v225 = vld [vmem:[#allocation5 + $0x10] sm:$0xf]
      %v226 = vld [vmem:[#allocation5 + $0x14] sm:$0xf]
      %v227 = vld [vmem:[#allocation5 + $0x18] sm:$0xf]
      %v228 = vld [vmem:[#allocation5 + $0x1c] sm:$0xf]
      %v229 = vld [vmem:[#allocation5 + $0x20] sm:$0xf]
      %v230 = vld [vmem:[#allocation5 + $0x24] sm:$0xf]
      %v231 = vld [vmem:[#allocation5 + $0x28] sm:$0xf]
      %v232 = vld [vmem:[#allocation5 + $0x2c] sm:$0xf]
      %v233 = vld [vmem:[#allocation5 + $0x30] sm:$0xf]
      %v234 = vld [vmem:[#allocation5 + $0x34] sm:$0xf]
      %v235 = vld [vmem:[#allocation5 + $0x38] sm:$0xf]
      %v236 = vld [vmem:[#allocation5 + $0x3c] sm:$0xf]
      %v237 = vld [vmem:[#allocation5 + $0x40] sm:$0xf]
      %v238 = vld [vmem:[#allocation5 + $0x44] sm:$0xf]
      %v239 = vld [vmem:[#allocation5 + $0x48] sm:$0xf]
      %v240 = vld [vmem:[#allocation5 + $0x4c] sm:$0xf]
      %v241 = vld [vmem:[#allocation5 + $0x50] sm:$0xf]
      %v242 = vld [vmem:[#allocation5 + $0x54] sm:$0xf]
      %v243 = vld [vmem:[#allocation5 + $0x58] sm:$0xf]
      %v244 = vld [vmem:[#allocation5 + $0x5c] sm:$0xf]
      %v245 = vld [vmem:[#allocation5 + $0x60] sm:$0xf]
      %v246 = vld [vmem:[#allocation5 + $0x64] sm:$0xf]
      %v247 = vld [vmem:[#allocation5 + $0x68] sm:$0xf]
      %v248 = vld [vmem:[#allocation5 + $0x6c] sm:$0xf]
      %v249 = vld [vmem:[#allocation5 + $0x70] sm:$0xf]
      %v250 = vld [vmem:[#allocation5 + $0x74] sm:$0xf]
      %v251 = vld [vmem:[#allocation5 + $0x78] sm:$0xf]
      %v252 = vld [vmem:[#allocation5 + $0x7c] sm:$0xf]
      %v285 = vunpack.c.l.b16 %v189
      %v286 = vunpack.c.h.b16 %v189
      %v287 = vunpack.c.l.b16 %v190
      %v288 = vunpack.c.h.b16 %v190
      %v289 = vunpack.c.l.b16 %v191
      %v290 = vunpack.c.h.b16 %v191
      %v291 = vunpack.c.l.b16 %v192
      %v292 = vunpack.c.h.b16 %v192
      %v293 = vunpack.c.l.b16 %v193
      %v294 = vunpack.c.h.b16 %v193
      %v295 = vunpack.c.l.b16 %v194
      %v296 = vunpack.c.h.b16 %v194
      %v297 = vunpack.c.l.b16 %v195
      %v298 = vunpack.c.h.b16 %v195
      %v299 = vunpack.c.l.b16 %v196
      %v300 = vunpack.c.h.b16 %v196
      %v301 = vunpack.c.l.b16 %v197
      %v302 = vunpack.c.h.b16 %v197
      %v303 = vunpack.c.l.b16 %v198
      %v304 = vunpack.c.h.b16 %v198
      %v305 = vunpack.c.l.b16 %v199
      %v306 = vunpack.c.h.b16 %v199
      %v307 = vunpack.c.l.b16 %v200
      %v308 = vunpack.c.h.b16 %v200
      %v309 = vunpack.c.l.b16 %v201
      %v310 = vunpack.c.h.b16 %v201
      %v311 = vunpack.c.l.b16 %v202
      %v312 = vunpack.c.h.b16 %v202
      %v313 = vunpack.c.l.b16 %v203
      %v314 = vunpack.c.h.b16 %v203
      %v315 = vunpack.c.l.b16 %v204
      %v316 = vunpack.c.h.b16 %v204
      %v317 = vunpack.c.l.b16 %v205
      %v318 = vunpack.c.h.b16 %v205
      %v319 = vunpack.c.l.b16 %v206
      %v320 = vunpack.c.h.b16 %v206
      %v321 = vunpack.c.l.b16 %v207
      %v322 = vunpack.c.h.b16 %v207
      %v323 = vunpack.c.l.b16 %v208
      %v324 = vunpack.c.h.b16 %v208
      %v325 = vunpack.c.l.b16 %v209
      %v326 = vunpack.c.h.b16 %v209
      %v327 = vunpack.c.l.b16 %v210
      %v328 = vunpack.c.h.b16 %v210
      %v329 = vunpack.c.l.b16 %v211
      %v330 = vunpack.c.h.b16 %v211
      %v331 = vunpack.c.l.b16 %v212
      %v332 = vunpack.c.h.b16 %v212
      %v333 = vunpack.c.l.b16 %v213
      %v334 = vunpack.c.h.b16 %v213
      %v335 = vunpack.c.l.b16 %v214
      %v336 = vunpack.c.h.b16 %v214
      %v337 = vunpack.c.l.b16 %v215
      %v338 = vunpack.c.h.b16 %v215
      %v339 = vunpack.c.l.b16 %v216
      %v340 = vunpack.c.h.b16 %v216
      %v341 = vunpack.c.l.b16 %v217
      %v342 = vunpack.c.h.b16 %v217
      %v343 = vunpack.c.l.b16 %v218
      %v344 = vunpack.c.h.b16 %v218
      %v345 = vunpack.c.l.b16 %v219
      %v346 = vunpack.c.h.b16 %v219
      %v347 = vunpack.c.l.b16 %v220
      %v348 = vunpack.c.h.b16 %v220
      %v349 = vpack.c.b16 %v287, %v285
      %v350 = vpack.c.b16 %v288, %v286
      %v351 = vpack.c.b16 %v291, %v289
      %v352 = vpack.c.b16 %v292, %v290
      %v353 = vpack.c.b16 %v295, %v293
      %v354 = vpack.c.b16 %v296, %v294
      %v355 = vpack.c.b16 %v299, %v297
      %v356 = vpack.c.b16 %v300, %v298
      %v357 = vpack.c.b16 %v303, %v301
      %v358 = vpack.c.b16 %v304, %v302
      %v359 = vpack.c.b16 %v307, %v305
      %v360 = vpack.c.b16 %v308, %v306
      %v361 = vpack.c.b16 %v311, %v309
      %v362 = vpack.c.b16 %v312, %v310
      %v363 = vpack.c.b16 %v315, %v313
      %v364 = vpack.c.b16 %v316, %v314
      %v365 = vpack.c.b16 %v319, %v317
      %v366 = vpack.c.b16 %v320, %v318
      %v367 = vpack.c.b16 %v323, %v321
      %v368 = vpack.c.b16 %v324, %v322
      %v369 = vpack.c.b16 %v327, %v325
      %v370 = vpack.c.b16 %v328, %v326
      %v371 = vpack.c.b16 %v331, %v329
      %v372 = vpack.c.b16 %v332, %v330
      %v373 = vpack.c.b16 %v335, %v333
      %v374 = vpack.c.b16 %v336, %v334
      %v375 = vpack.c.b16 %v339, %v337
      %v376 = vpack.c.b16 %v340, %v338
      %v377 = vpack.c.b16 %v343, %v341
      %v378 = vpack.c.b16 %v344, %v342
      %v379 = vpack.c.b16 %v347, %v345
      %v380 = vpack.c.b16 %v348, %v346
      %v445 = vunpack.c.l.b16 %v221
      %v446 = vunpack.c.l.b16 %v222
      %v447 = vunpack.c.l.b16 %v223
      %v448 = vunpack.c.l.b16 %v224
      %v449 = vunpack.c.l.b16 %v225
      %v450 = vunpack.c.l.b16 %v226
      %v451 = vunpack.c.l.b16 %v227
      %v452 = vunpack.c.l.b16 %v228
      %v453 = vunpack.c.l.b16 %v229
      %v454 = vunpack.c.l.b16 %v230
      %v455 = vunpack.c.l.b16 %v231
      %v456 = vunpack.c.l.b16 %v232
      %v457 = vunpack.c.l.b16 %v233
      %v458 = vunpack.c.l.b16 %v234
      %v459 = vunpack.c.l.b16 %v235
      %v460 = vunpack.c.l.b16 %v236
      %v461 = vunpack.c.l.b16 %v237
      %v462 = vunpack.c.l.b16 %v238
      %v463 = vunpack.c.l.b16 %v239
      %v464 = vunpack.c.l.b16 %v240
      %v465 = vunpack.c.l.b16 %v241
      %v466 = vunpack.c.l.b16 %v242
      %v467 = vunpack.c.l.b16 %v243
      %v468 = vunpack.c.l.b16 %v244
      %v469 = vunpack.c.l.b16 %v245
      %v470 = vunpack.c.l.b16 %v246
      %v471 = vunpack.c.l.b16 %v247
      %v472 = vunpack.c.l.b16 %v248
      %v473 = vunpack.c.l.b16 %v249
      %v474 = vunpack.c.l.b16 %v250
      %v475 = vunpack.c.l.b16 %v251
      %v476 = vunpack.c.l.b16 %v252
      %v477 = vpack.c.b16 %v446, %v445
      %v478 = vpack.c.b16 %v448, %v447
      %v479 = vpack.c.b16 %v450, %v449
      %v480 = vpack.c.b16 %v452, %v451
      %v481 = vpack.c.b16 %v454, %v453
      %v482 = vpack.c.b16 %v456, %v455
      %v483 = vpack.c.b16 %v458, %v457
      %v484 = vpack.c.b16 %v460, %v459
      %v485 = vpack.c.b16 %v462, %v461
      %v486 = vpack.c.b16 %v464, %v463
      %v487 = vpack.c.b16 %v466, %v465
      %v488 = vpack.c.b16 %v468, %v467
      %v489 = vpack.c.b16 %v470, %v469
      %v490 = vpack.c.b16 %v472, %v471
      %v491 = vpack.c.b16 %v474, %v473
      %v492 = vpack.c.b16 %v476, %v475
      %509 = vmatprep.subr.bf16.mxu0 0
      %510 = vmatpush1.bf16.msra.mxu0 %v477
      %511 = vmatprep.subr.bf16.mxu0 0
      %512 = vmatpush1.bf16.msra.mxu0 %v478
      %513 = vmatprep.subr.bf16.mxu0 0
      %514 = vmatpush1.bf16.msra.mxu0 %v479
      %515 = vmatprep.subr.bf16.mxu0 0
      %516 = vmatpush1.bf16.msra.mxu0 %v480
      %517 = vmatprep.subr.bf16.mxu0 0
      %518 = vmatpush1.bf16.msra.mxu0 %v481
      %519 = vmatprep.subr.bf16.mxu0 0
      %520 = vmatpush1.bf16.msra.mxu0 %v482
      %521 = vmatprep.subr.bf16.mxu0 0
      %522 = vmatpush1.bf16.msra.mxu0 %v483
      %523 = vmatprep.subr.bf16.mxu0 0
      %524 = vmatpush1.bf16.msra.mxu0 %v484
      %525 = vmatprep.subr.bf16.mxu0 0
      %526 = vmatpush1.bf16.msra.mxu0 %v485
      %527 = vmatprep.subr.bf16.mxu0 0
      %528 = vmatpush1.bf16.msra.mxu0 %v486
      %529 = vmatprep.subr.bf16.mxu0 0
      %530 = vmatpush1.bf16.msra.mxu0 %v487
      %531 = vmatprep.subr.bf16.mxu0 0
      %532 = vmatpush1.bf16.msra.mxu0 %v488
      %533 = vmatprep.subr.bf16.mxu0 0
      %534 = vmatpush1.bf16.msra.mxu0 %v489
      %535 = vmatprep.subr.bf16.mxu0 0
      %536 = vmatpush1.bf16.msra.mxu0 %v490
      %537 = vmatprep.subr.bf16.mxu0 0
      %538 = vmatpush1.bf16.msra.mxu0 %v491
      %539 = vmatprep.subr.bf16.mxu0 0
      %540 = vmatpush1.bf16.msra.mxu0 %v492
      %541 = vmatprep.mubr.bf16.mxu0 %v350
      %542 = vmatmul.mubr.bf16.gmra.mrb[0].mxu0 %v349
      %v543 = vpop.f32.mrb[0].mxu0
      %v544 = vadd.f32 0.0, %v543
      %v545 = vpop.f32.mrb[0].mxu0
      %v546 = vpop.f32.mrb[0].mxu0
      %v547 = vadd.f32 0.0, %v546
      %v548 = vpop.f32.mrb[0].mxu0
      %549 = vmatprep.mubr.bf16.mxu0 %v352
      %550 = vmatmul.mubr.bf16.gmra.mrb[0].mxu0 %v351
      %v551 = vpop.f32.mrb[0].mxu0
      %v552 = vadd.f32 0.0, %v551
      %v553 = vpop.f32.mrb[0].mxu0
      %v554 = vpop.f32.mrb[0].mxu0
      %v555 = vadd.f32 0.0, %v554
      %v556 = vpop.f32.mrb[0].mxu0
      %557 = vmatprep.mubr.bf16.mxu0 %v354
      %558 = vmatmul.mubr.bf16.gmra.mrb[0].mxu0 %v353
      %v559 = vpop.f32.mrb[0].mxu0
      %v560 = vadd.f32 0.0, %v559
      %v561 = vpop.f32.mrb[0].mxu0
      %v562 = vpop.f32.mrb[0].mxu0
      %v563 = vadd.f32 0.0, %v562
      %v564 = vpop.f32.mrb[0].mxu0
      %565 = vmatprep.mubr.bf16.mxu0 %v356
      %566 = vmatmul.mubr.bf16.gmra.mrb[0].mxu0 %v355
      %v567 = vpop.f32.mrb[0].mxu0
      %v568 = vadd.f32 0.0, %v567
      %v569 = vpop.f32.mrb[0].mxu0
      %v570 = vpop.f32.mrb[0].mxu0
      %v571 = vadd.f32 0.0, %v570
      %v572 = vpop.f32.mrb[0].mxu0
      %573 = vmatprep.mubr.bf16.mxu0 %v358
      %574 = vmatmul.mubr.bf16.gmra.mrb[0].mxu0 %v357
      %v575 = vpop.f32.mrb[0].mxu0
      %v576 = vadd.f32 0.0, %v575
      %v577 = vpop.f32.mrb[0].mxu0
      %v578 = vpop.f32.mrb[0].mxu0
      %v579 = vadd.f32 0.0, %v578
      %v580 = vpop.f32.mrb[0].mxu0
      %581 = vmatprep.mubr.bf16.mxu0 %v360
      %582 = vmatmul.mubr.bf16.gmra.mrb[0].mxu0 %v359
      %v583 = vpop.f32.mrb[0].mxu0
      %v584 = vadd.f32 0.0, %v583
      %v585 = vpop.f32.mrb[0].mxu0
      %v586 = vpop.f32.mrb[0].mxu0
      %v587 = vadd.f32 0.0, %v586
      %v588 = vpop.f32.mrb[0].mxu0
      %589 = vmatprep.mubr.bf16.mxu0 %v362
      %590 = vmatmul.mubr.bf16.gmra.mrb[0].mxu0 %v361
      %v591 = vpop.f32.mrb[0].mxu0
      %v592 = vadd.f32 0.0, %v591
      %v593 = vpop.f32.mrb[0].mxu0
      %v594 = vpop.f32.mrb[0].mxu0
      %v595 = vadd.f32 0.0, %v594
      %v596 = vpop.f32.mrb[0].mxu0
      %597 = vmatprep.mubr.bf16.mxu0 %v364
      %598 = vmatmul.mubr.bf16.gmra.mrb[0].mxu0 %v363
      %v599 = vpop.f32.mrb[0].mxu0
      %v600 = vadd.f32 0.0, %v599
      %v601 = vpop.f32.mrb[0].mxu0
      %v602 = vpop.f32.mrb[0].mxu0
      %v603 = vadd.f32 0.0, %v602
      %v604 = vpop.f32.mrb[0].mxu0
      %605 = vmatprep.mubr.bf16.mxu0 %v366
      %606 = vmatmul.mubr.bf16.gmra.mrb[0].mxu0 %v365
      %v607 = vpop.f32.mrb[0].mxu0
      %v608 = vadd.f32 0.0, %v607
      %v609 = vpop.f32.mrb[0].mxu0
      %v610 = vpop.f32.mrb[0].mxu0
      %v611 = vadd.f32 0.0, %v610
      %v612 = vpop.f32.mrb[0].mxu0
      %613 = vmatprep.mubr.bf16.mxu0 %v368
      %614 = vmatmul.mubr.bf16.gmra.mrb[0].mxu0 %v367
      %v615 = vpop.f32.mrb[0].mxu0
      %v616 = vadd.f32 0.0, %v615
      %v617 = vpop.f32.mrb[0].mxu0
      %v618 = vpop.f32.mrb[0].mxu0
      %v619 = vadd.f32 0.0, %v618
      %v620 = vpop.f32.mrb[0].mxu0
      %621 = vmatprep.mubr.bf16.mxu0 %v370
      %622 = vmatmul.mubr.bf16.gmra.mrb[0].mxu0 %v369
      %v623 = vpop.f32.mrb[0].mxu0
      %v624 = vadd.f32 0.0, %v623
      %v625 = vpop.f32.mrb[0].mxu0
      %v626 = vpop.f32.mrb[0].mxu0
      %v627 = vadd.f32 0.0, %v626
      %v628 = vpop.f32.mrb[0].mxu0
      %629 = vmatprep.mubr.bf16.mxu0 %v372
      %630 = vmatmul.mubr.bf16.gmra.mrb[0].mxu0 %v371
      %v631 = vpop.f32.mrb[0].mxu0
      %v632 = vadd.f32 0.0, %v631
      %v633 = vpop.f32.mrb[0].mxu0
      %v634 = vpop.f32.mrb[0].mxu0
      %v635 = vadd.f32 0.0, %v634
      %v636 = vpop.f32.mrb[0].mxu0
      %637 = vmatprep.mubr.bf16.mxu0 %v374
      %638 = vmatmul.mubr.bf16.gmra.mrb[0].mxu0 %v373
      %v639 = vpop.f32.mrb[0].mxu0
      %v640 = vadd.f32 0.0, %v639
      %v641 = vpop.f32.mrb[0].mxu0
      %v642 = vpop.f32.mrb[0].mxu0
      %v643 = vadd.f32 0.0, %v642
      %v644 = vpop.f32.mrb[0].mxu0
      %645 = vmatprep.mubr.bf16.mxu0 %v376
      %646 = vmatmul.mubr.bf16.gmra.mrb[0].mxu0 %v375
      %v647 = vpop.f32.mrb[0].mxu0
      %v648 = vadd.f32 0.0, %v647
      %v649 = vpop.f32.mrb[0].mxu0
      %v650 = vpop.f32.mrb[0].mxu0
      %v651 = vadd.f32 0.0, %v650
      %v652 = vpop.f32.mrb[0].mxu0
      %653 = vmatprep.mubr.bf16.mxu0 %v378
      %654 = vmatmul.mubr.bf16.gmra.mrb[0].mxu0 %v377
      %v655 = vpop.f32.mrb[0].mxu0
      %v656 = vadd.f32 0.0, %v655
      %v657 = vpop.f32.mrb[0].mxu0
      %v658 = vpop.f32.mrb[0].mxu0
      %v659 = vadd.f32 0.0, %v658
      %v660 = vpop.f32.mrb[0].mxu0
      %661 = vmatprep.mubr.bf16.mxu0 %v380
      %662 = vmatmul.mubr.bf16.gmra.mrb[0].mxu0 %v379
      %v663 = vpop.f32.mrb[0].mxu0
      %v664 = vadd.f32 0.0, %v663
      %v665 = vpop.f32.mrb[0].mxu0
      %v666 = vpop.f32.mrb[0].mxu0
      %v667 = vadd.f32 0.0, %v666
      %v668 = vpop.f32.mrb[0].mxu0
      %669 = vdwg.mxu0
      %v670 = vadd.f32 %v157, %v544
      %v671 = vadd.f32 %v158, %v547
      %v672 = vadd.f32 %v159, %v552
      %v673 = vadd.f32 %v160, %v555
      %v674 = vadd.f32 %v161, %v560
      %v675 = vadd.f32 %v162, %v563
      %v676 = vadd.f32 %v163, %v568
      %v677 = vadd.f32 %v164, %v571
      %v678 = vadd.f32 %v165, %v576
      %v679 = vadd.f32 %v166, %v579
      %v680 = vadd.f32 %v167, %v584
      %v681 = vadd.f32 %v168, %v587
      %v682 = vadd.f32 %v169, %v592
      %v683 = vadd.f32 %v170, %v595
      %v684 = vadd.f32 %v171, %v600
      %v685 = vadd.f32 %v172, %v603
      %v686 = vadd.f32 %v173, %v608
      %v687 = vadd.f32 %v174, %v611
      %v688 = vadd.f32 %v175, %v616
      %v689 = vadd.f32 %v176, %v619
      %v690 = vadd.f32 %v177, %v624
      %v691 = vadd.f32 %v178, %v627
      %v692 = vadd.f32 %v179, %v632
      %v693 = vadd.f32 %v180, %v635
      %v694 = vadd.f32 %v181, %v640
      %v695 = vadd.f32 %v182, %v643
      %v696 = vadd.f32 %v183, %v648
      %v697 = vadd.f32 %v184, %v651
      %v698 = vadd.f32 %v185, %v656
      %v699 = vadd.f32 %v186, %v659
      %v700 = vadd.f32 %v187, %v664
      %v701 = vadd.f32 %v188, %v667
      %702 = vst [vmem:[#allocation11] sm:$0xff] %v670
      %703 = vst [vmem:[#allocation11 + $0x8] sm:$0xff] %v671
      %704 = vst [vmem:[#allocation11 + $0x10] sm:$0xff] %v672
      %705 = vst [vmem:[#allocation11 + $0x18] sm:$0xff] %v673
      %706 = vst [vmem:[#allocation11 + $0x20] sm:$0xff] %v674
      %707 = vst [vmem:[#allocation11 + $0x28] sm:$0xff] %v675
      %708 = vst [vmem:[#allocation11 + $0x30] sm:$0xff] %v676
      %709 = vst [vmem:[#allocation11 + $0x38] sm:$0xff] %v677
      %710 = vst [vmem:[#allocation11 + $0x40] sm:$0xff] %v678
      %711 = vst [vmem:[#allocation11 + $0x48] sm:$0xff] %v679
      %712 = vst [vmem:[#allocation11 + $0x50] sm:$0xff] %v680
      %713 = vst [vmem:[#allocation11 + $0x58] sm:$0xff] %v681
      %714 = vst [vmem:[#allocation11 + $0x60] sm:$0xff] %v682
      %715 = vst [vmem:[#allocation11 + $0x68] sm:$0xff] %v683
      %716 = vst [vmem:[#allocation11 + $0x70] sm:$0xff] %v684
      %717 = vst [vmem:[#allocation11 + $0x78] sm:$0xff] %v685
      %718 = vst [vmem:[#allocation11 + $0x80] sm:$0xff] %v686
      %719 = vst [vmem:[#allocation11 + $0x88] sm:$0xff] %v687
      %720 = vst [vmem:[#allocation11 + $0x90] sm:$0xff] %v688
      %721 = vst [vmem:[#allocation11 + $0x98] sm:$0xff] %v689
      %722 = vst [vmem:[#allocation11 + $0xa0] sm:$0xff] %v690
      %723 = vst [vmem:[#allocation11 + $0xa8] sm:$0xff] %v691
      %724 = vst [vmem:[#allocation11 + $0xb0] sm:$0xff] %v692
      %725 = vst [vmem:[#allocation11 + $0xb8] sm:$0xff] %v693
      %726 = vst [vmem:[#allocation11 + $0xc0] sm:$0xff] %v694
      %727 = vst [vmem:[#allocation11 + $0xc8] sm:$0xff] %v695
      %728 = vst [vmem:[#allocation11 + $0xd0] sm:$0xff] %v696
      %729 = vst [vmem:[#allocation11 + $0xd8] sm:$0xff] %v697
      %730 = vst [vmem:[#allocation11 + $0xe0] sm:$0xff] %v698
      %731 = vst [vmem:[#allocation11 + $0xe8] sm:$0xff] %v699
      %732 = vst [vmem:[#allocation11 + $0xf0] sm:$0xff] %v700
      %733 = vst [vmem:[#allocation11 + $0xf8] sm:$0xff] %v701
    $region41: #{tpu_custom_call.1} parent=1 // pred_fallthru
      _
    // Predicated region
    $region42: #{tpu_custom_call.1} parent=1 // pred_check
      %p734 = pneg %p116
    $region43: #{tpu_custom_call.1} parent=1 // pred_check_branch
      %736 = sbr.rel (%p734) target = $region45
    $region44: #{tpu_custom_call.1} parent=1 // pred_region
      %v737 = vld [vmem:[%s2] sm:$0xff]
      %v738 = vld [vmem:[%s2 + $0x8] sm:$0xff]
      %v739 = vld [vmem:[%s2 + $0x10] sm:$0xff]
      %v740 = vld [vmem:[%s2 + $0x18] sm:$0xff]
      %v741 = vld [vmem:[%s2 + $0x20] sm:$0xff]
      %v742 = vld [vmem:[%s2 + $0x28] sm:$0xff]
      %v743 = vld [vmem:[%s2 + $0x30] sm:$0xff]
      %v744 = vld [vmem:[%s2 + $0x38] sm:$0xff]
      %v745 = vld [vmem:[%s2 + $0x40] sm:$0xff]
      %v746 = vld [vmem:[%s2 + $0x48] sm:$0xff]
      %v747 = vld [vmem:[%s2 + $0x50] sm:$0xff]
      %v748 = vld [vmem:[%s2 + $0x58] sm:$0xff]
      %v749 = vld [vmem:[%s2 + $0x60] sm:$0xff]
      %v750 = vld [vmem:[%s2 + $0x68] sm:$0xff]
      %v751 = vld [vmem:[%s2 + $0x70] sm:$0xff]
      %v752 = vld [vmem:[%s2 + $0x78] sm:$0xff]
      %v753 = vld [vmem:[%s2 + $0x80] sm:$0xff]
      %v754 = vld [vmem:[%s2 + $0x88] sm:$0xff]
      %v755 = vld [vmem:[%s2 + $0x90] sm:$0xff]
      %v756 = vld [vmem:[%s2 + $0x98] sm:$0xff]
      %v757 = vld [vmem:[%s2 + $0xa0] sm:$0xff]
      %v758 = vld [vmem:[%s2 + $0xa8] sm:$0xff]
      %v759 = vld [vmem:[%s2 + $0xb0] sm:$0xff]
      %v760 = vld [vmem:[%s2 + $0xb8] sm:$0xff]
      %v761 = vld [vmem:[%s2 + $0xc0] sm:$0xff]
      %v762 = vld [vmem:[%s2 + $0xc8] sm:$0xff]
      %v763 = vld [vmem:[%s2 + $0xd0] sm:$0xff]
      %v764 = vld [vmem:[%s2 + $0xd8] sm:$0xff]
      %v765 = vld [vmem:[%s2 + $0xe0] sm:$0xff]
      %v766 = vld [vmem:[%s2 + $0xe8] sm:$0xff]
      %v767 = vld [vmem:[%s2 + $0xf0] sm:$0xff]
      %v768 = vld [vmem:[%s2 + $0xf8] sm:$0xff]
      %v769 = vmul.f32 %v737, 0.9
      %v770 = vmul.f32 %v738, 0.9
      %v771 = vmul.f32 %v739, 0.9
      %v772 = vmul.f32 %v740, 0.9
      %v773 = vmul.f32 %v741, 0.9
      %v774 = vmul.f32 %v742, 0.9
      %v775 = vmul.f32 %v743, 0.9
      %v776 = vmul.f32 %v744, 0.9
      %v777 = vmul.f32 %v745, 0.9
      %v778 = vmul.f32 %v746, 0.9
      %v779 = vmul.f32 %v747, 0.9
      %v780 = vmul.f32 %v748, 0.9
      %v781 = vmul.f32 %v749, 0.9
      %v782 = vmul.f32 %v750, 0.9
      %v783 = vmul.f32 %v751, 0.9
      %v784 = vmul.f32 %v752, 0.9
      %v785 = vmul.f32 %v753, 0.9
      %v786 = vmul.f32 %v754, 0.9
      %v787 = vmul.f32 %v755, 0.9
      %v788 = vmul.f32 %v756, 0.9
      %v789 = vmul.f32 %v757, 0.9
      %v790 = vmul.f32 %v758, 0.9
      %v791 = vmul.f32 %v759, 0.9
      %v792 = vmul.f32 %v760, 0.9
      %v793 = vmul.f32 %v761, 0.9
      %v794 = vmul.f32 %v762, 0.9
      %v795 = vmul.f32 %v763, 0.9
      %v796 = vmul.f32 %v764, 0.9
      %v797 = vmul.f32 %v765, 0.9
      %v798 = vmul.f32 %v766, 0.9
      %v799 = vmul.f32 %v767, 0.9
      %v800 = vmul.f32 %v768, 0.9
      %v801 = vadd.f32 %v769, 0.1
      %v802 = vadd.f32 %v770, 0.1
      %v803 = vadd.f32 %v771, 0.1
      %v804 = vadd.f32 %v772, 0.1
      %v805 = vadd.f32 %v773, 0.1
      %v806 = vadd.f32 %v774, 0.1
      %v807 = vadd.f32 %v775, 0.1
      %v808 = vadd.f32 %v776, 0.1
      %v809 = vadd.f32 %v777, 0.1
      %v810 = vadd.f32 %v778, 0.1
      %v811 = vadd.f32 %v779, 0.1
      %v812 = vadd.f32 %v780, 0.1
      %v813 = vadd.f32 %v781, 0.1
      %v814 = vadd.f32 %v782, 0.1
      %v815 = vadd.f32 %v783, 0.1
      %v816 = vadd.f32 %v784, 0.1
      %v817 = vadd.f32 %v785, 0.1
      %v818 = vadd.f32 %v786, 0.1
      %v819 = vadd.f32 %v787, 0.1
      %v820 = vadd.f32 %v788, 0.1
      %v821 = vadd.f32 %v789, 0.1
      %v822 = vadd.f32 %v790, 0.1
      %v823 = vadd.f32 %v791, 0.1
      %v824 = vadd.f32 %v792, 0.1
      %v825 = vadd.f32 %v793, 0.1
      %v826 = vadd.f32 %v794, 0.1
      %v827 = vadd.f32 %v795, 0.1
      %v828 = vadd.f32 %v796, 0.1
      %v829 = vadd.f32 %v797, 0.1
      %v830 = vadd.f32 %v798, 0.1
      %v831 = vadd.f32 %v799, 0.1
      %v832 = vadd.f32 %v800, 0.1
      %v833 = vrsqrt.pop %v801
      %v834 = vrsqrt.pop %v802
      %v835 = vrsqrt.pop %v803
      %v836 = vrsqrt.pop %v804
      %v837 = vrsqrt.pop %v805
      %v838 = vrsqrt.pop %v806
      %v839 = vrsqrt.pop %v807
      %v840 = vrsqrt.pop %v808
      %v841 = vrsqrt.pop %v809
      %v842 = vrsqrt.pop %v810
      %v843 = vrsqrt.pop %v811
      %v844 = vrsqrt.pop %v812
      %v845 = vrsqrt.pop %v813
      %v846 = vrsqrt.pop %v814
      %v847 = vrsqrt.pop %v815
      %v848 = vrsqrt.pop %v816
      %v849 = vrsqrt.pop %v817
      %v850 = vrsqrt.pop %v818
      %v851 = vrsqrt.pop %v819
      %v852 = vrsqrt.pop %v820
      %v853 = vrsqrt.pop %v821
      %v854 = vrsqrt.pop %v822
      %v855 = vrsqrt.pop %v823
      %v856 = vrsqrt.pop %v824
      %v857 = vrsqrt.pop %v825
      %v858 = vrsqrt.pop %v826
      %v859 = vrsqrt.pop %v827
      %v860 = vrsqrt.pop %v828
      %v861 = vrsqrt.pop %v829
      %v862 = vrsqrt.pop %v830
      %v863 = vrsqrt.pop %v831
      %v864 = vrsqrt.pop %v832
      %v865 = vmul.f32 %v833, %v833
      %v866 = vmul.f32 %v834, %v834
      %v867 = vmul.f32 %v835, %v835
      %v868 = vmul.f32 %v836, %v836
      %v869 = vmul.f32 %v837, %v837
      %v870 = vmul.f32 %v838, %v838
      %v871 = vmul.f32 %v839, %v839
      %v872 = vmul.f32 %v840, %v840
      %v873 = vmul.f32 %v841, %v841
      %v874 = vmul.f32 %v842, %v842
      %v875 = vmul.f32 %v843, %v843
      %v876 = vmul.f32 %v844, %v844
      %v877 = vmul.f32 %v845, %v845
      %v878 = vmul.f32 %v846, %v846
      %v879 = vmul.f32 %v847, %v847
      %v880 = vmul.f32 %v848, %v848
      %v881 = vmul.f32 %v849, %v849
      %v882 = vmul.f32 %v850, %v850
      %v883 = vmul.f32 %v851, %v851
      %v884 = vmul.f32 %v852, %v852
      %v885 = vmul.f32 %v853, %v853
      %v886 = vmul.f32 %v854, %v854
      %v887 = vmul.f32 %v855, %v855
      %v888 = vmul.f32 %v856, %v856
      %v889 = vmul.f32 %v857, %v857
      %v890 = vmul.f32 %v858, %v858
      %v891 = vmul.f32 %v859, %v859
      %v892 = vmul.f32 %v860, %v860
      %v893 = vmul.f32 %v861, %v861
      %v894 = vmul.f32 %v862, %v862
      %v895 = vmul.f32 %v863, %v863
      %v896 = vmul.f32 %v864, %v864
      %v897 = vld [vmem:[#allocation8] sm:$0xff]
      %v898 = vld [vmem:[#allocation8 + $0x8] sm:$0xff]
      %v899 = vld [vmem:[#allocation8 + $0x10] sm:$0xff]
      %v900 = vld [vmem:[#allocation8 + $0x18] sm:$0xff]
      %v901 = vld [vmem:[#allocation8 + $0x20] sm:$0xff]
      %v902 = vld [vmem:[#allocation8 + $0x28] sm:$0xff]
      %v903 = vld [vmem:[#allocation8 + $0x30] sm:$0xff]
      %v904 = vld [vmem:[#allocation8 + $0x38] sm:$0xff]
      %v905 = vld [vmem:[#allocation8 + $0x40] sm:$0xff]
      %v906 = vld [vmem:[#allocation8 + $0x48] sm:$0xff]
      %v907 = vld [vmem:[#allocation8 + $0x50] sm:$0xff]
      %v908 = vld [vmem:[#allocation8 + $0x58] sm:$0xff]
      %v909 = vld [vmem:[#allocation8 + $0x60] sm:$0xff]
      %v910 = vld [vmem:[#allocation8 + $0x68] sm:$0xff]
      %v911 = vld [vmem:[#allocation8 + $0x70] sm:$0xff]
      %v912 = vld [vmem:[#allocation8 + $0x78] sm:$0xff]
      %v913 = vld [vmem:[#allocation8 + $0x80] sm:$0xff]
      %v914 = vld [vmem:[#allocation8 + $0x88] sm:$0xff]
      %v915 = vld [vmem:[#allocation8 + $0x90] sm:$0xff]
      %v916 = vld [vmem:[#allocation8 + $0x98] sm:$0xff]
      %v917 = vld [vmem:[#allocation8 + $0xa0] sm:$0xff]
      %v918 = vld [vmem:[#allocation8 + $0xa8] sm:$0xff]
      %v919 = vld [vmem:[#allocation8 + $0xb0] sm:$0xff]
      %v920 = vld [vmem:[#allocation8 + $0xb8] sm:$0xff]
      %v921 = vld [vmem:[#allocation8 + $0xc0] sm:$0xff]
      %v922 = vld [vmem:[#allocation8 + $0xc8] sm:$0xff]
      %v923 = vld [vmem:[#allocation8 + $0xd0] sm:$0xff]
      %v924 = vld [vmem:[#allocation8 + $0xd8] sm:$0xff]
      %v925 = vld [vmem:[#allocation8 + $0xe0] sm:$0xff]
      %v926 = vld [vmem:[#allocation8 + $0xe8] sm:$0xff]
      %v927 = vld [vmem:[#allocation8 + $0xf0] sm:$0xff]
      %v928 = vld [vmem:[#allocation8 + $0xf8] sm:$0xff]
      %v929 = vmul.f32 %v897, 0.5
      %v930 = vmul.f32 %v898, 0.5
      %v931 = vmul.f32 %v899, 0.5
      %v932 = vmul.f32 %v900, 0.5
      %v933 = vmul.f32 %v901, 0.5
      %v934 = vmul.f32 %v902, 0.5
      %v935 = vmul.f32 %v903, 0.5
      %v936 = vmul.f32 %v904, 0.5
      %v937 = vmul.f32 %v905, 0.5
      %v938 = vmul.f32 %v906, 0.5
      %v939 = vmul.f32 %v907, 0.5
      %v940 = vmul.f32 %v908, 0.5
      %v941 = vmul.f32 %v909, 0.5
      %v942 = vmul.f32 %v910, 0.5
      %v943 = vmul.f32 %v911, 0.5
      %v944 = vmul.f32 %v912, 0.5
      %v945 = vmul.f32 %v913, 0.5
      %v946 = vmul.f32 %v914, 0.5
      %v947 = vmul.f32 %v915, 0.5
      %v948 = vmul.f32 %v916, 0.5
      %v949 = vmul.f32 %v917, 0.5
      %v950 = vmul.f32 %v918, 0.5
      %v951 = vmul.f32 %v919, 0.5
      %v952 = vmul.f32 %v920, 0.5
      %v953 = vmul.f32 %v921, 0.5
      %v954 = vmul.f32 %v922, 0.5
      %v955 = vmul.f32 %v923, 0.5
      %v956 = vmul.f32 %v924, 0.5
      %v957 = vmul.f32 %v925, 0.5
      %v958 = vmul.f32 %v926, 0.5
      %v959 = vmul.f32 %v927, 0.5
      %v960 = vmul.f32 %v928, 0.5
      %v961 = vld [vmem:[#allocation11] sm:$0xff]
      %v962 = vld [vmem:[#allocation11 + $0x8] sm:$0xff]
      %v963 = vld [vmem:[#allocation11 + $0x10] sm:$0xff]
      %v964 = vld [vmem:[#allocation11 + $0x18] sm:$0xff]
      %v965 = vld [vmem:[#allocation11 + $0x20] sm:$0xff]
      %v966 = vld [vmem:[#allocation11 + $0x28] sm:$0xff]
      %v967 = vld [vmem:[#allocation11 + $0x30] sm:$0xff]
      %v968 = vld [vmem:[#allocation11 + $0x38] sm:$0xff]
      %v969 = vld [vmem:[#allocation11 + $0x40] sm:$0xff]
      %v970 = vld [vmem:[#allocation11 + $0x48] sm:$0xff]
      %v971 = vld [vmem:[#allocation11 + $0x50] sm:$0xff]
      %v972 = vld [vmem:[#allocation11 + $0x58] sm:$0xff]
      %v973 = vld [vmem:[#allocation11 + $0x60] sm:$0xff]
      %v974 = vld [vmem:[#allocation11 + $0x68] sm:$0xff]
      %v975 = vld [vmem:[#allocation11 + $0x70] sm:$0xff]
      %v976 = vld [vmem:[#allocation11 + $0x78] sm:$0xff]
      %v977 = vld [vmem:[#allocation11 + $0x80] sm:$0xff]
      %v978 = vld [vmem:[#allocation11 + $0x88] sm:$0xff]
      %v979 = vld [vmem:[#allocation11 + $0x90] sm:$0xff]
      %v980 = vld [vmem:[#allocation11 + $0x98] sm:$0xff]
      %v981 = vld [vmem:[#allocation11 + $0xa0] sm:$0xff]
      %v982 = vld [vmem:[#allocation11 + $0xa8] sm:$0xff]
      %v983 = vld [vmem:[#allocation11 + $0xb0] sm:$0xff]
      %v984 = vld [vmem:[#allocation11 + $0xb8] sm:$0xff]
      %v985 = vld [vmem:[#allocation11 + $0xc0] sm:$0xff]
      %v986 = vld [vmem:[#allocation11 + $0xc8] sm:$0xff]
      %v987 = vld [vmem:[#allocation11 + $0xd0] sm:$0xff]
      %v988 = vld [vmem:[#allocation11 + $0xd8] sm:$0xff]
      %v989 = vld [vmem:[#allocation11 + $0xe0] sm:$0xff]
      %v990 = vld [vmem:[#allocation11 + $0xe8] sm:$0xff]
      %v991 = vld [vmem:[#allocation11 + $0xf0] sm:$0xff]
      %v992 = vld [vmem:[#allocation11 + $0xf8] sm:$0xff]
      %994 = vset.pattern.permute.xlu0 0
      %995 = vperm.xlu0 %994, %v833
      %v996 = vpop.permute.xlu0 %995
      %999 = vset.pattern.permute.xlu0 0
      %1000 = vperm.xlu0 %999, %v834
      %v1001 = vpop.permute.xlu0 %1000
      %1004 = vset.pattern.permute.xlu0 0
      %1005 = vperm.xlu0 %1004, %v835
      %v1006 = vpop.permute.xlu0 %1005
      %1009 = vset.pattern.permute.xlu0 0
      %1010 = vperm.xlu0 %1009, %v836
      %v1011 = vpop.permute.xlu0 %1010
      %1014 = vset.pattern.permute.xlu0 0
      %1015 = vperm.xlu0 %1014, %v837
      %v1016 = vpop.permute.xlu0 %1015
      %1019 = vset.pattern.permute.xlu0 0
      %1020 = vperm.xlu0 %1019, %v838
      %v1021 = vpop.permute.xlu0 %1020
      %1024 = vset.pattern.permute.xlu0 0
      %1025 = vperm.xlu0 %1024, %v839
      %v1026 = vpop.permute.xlu0 %1025
      %1029 = vset.pattern.permute.xlu0 0
      %1030 = vperm.xlu0 %1029, %v840
      %v1031 = vpop.permute.xlu0 %1030
      %1034 = vset.pattern.permute.xlu0 0
      %1035 = vperm.xlu0 %1034, %v841
      %v1036 = vpop.permute.xlu0 %1035
      %1039 = vset.pattern.permute.xlu0 0
      %1040 = vperm.xlu0 %1039, %v842
      %v1041 = vpop.permute.xlu0 %1040
      %1044 = vset.pattern.permute.xlu0 0
      %1045 = vperm.xlu0 %1044, %v843
      %v1046 = vpop.permute.xlu0 %1045
      %1049 = vset.pattern.permute.xlu0 0
      %1050 = vperm.xlu0 %1049, %v844
      %v1051 = vpop.permute.xlu0 %1050
      %1054 = vset.pattern.permute.xlu0 0
      %1055 = vperm.xlu0 %1054, %v845
      %v1056 = vpop.permute.xlu0 %1055
      %1059 = vset.pattern.permute.xlu0 0
      %1060 = vperm.xlu0 %1059, %v846
      %v1061 = vpop.permute.xlu0 %1060
      %1064 = vset.pattern.permute.xlu0 0
      %1065 = vperm.xlu0 %1064, %v847
      %v1066 = vpop.permute.xlu0 %1065
      %1069 = vset.pattern.permute.xlu0 0
      %1070 = vperm.xlu0 %1069, %v848
      %v1071 = vpop.permute.xlu0 %1070
      %1074 = vset.pattern.permute.xlu0 0
      %1075 = vperm.xlu0 %1074, %v849
      %v1076 = vpop.permute.xlu0 %1075
      %1079 = vset.pattern.permute.xlu0 0
      %1080 = vperm.xlu0 %1079, %v850
      %v1081 = vpop.permute.xlu0 %1080
      %1084 = vset.pattern.permute.xlu0 0
      %1085 = vperm.xlu0 %1084, %v851
      %v1086 = vpop.permute.xlu0 %1085
      %1089 = vset.pattern.permute.xlu0 0
      %1090 = vperm.xlu0 %1089, %v852
      %v1091 = vpop.permute.xlu0 %1090
      %1094 = vset.pattern.permute.xlu0 0
      %1095 = vperm.xlu0 %1094, %v853
      %v1096 = vpop.permute.xlu0 %1095
      %1099 = vset.pattern.permute.xlu0 0
      %1100 = vperm.xlu0 %1099, %v854
      %v1101 = vpop.permute.xlu0 %1100
      %1104 = vset.pattern.permute.xlu0 0
      %1105 = vperm.xlu0 %1104, %v855
      %v1106 = vpop.permute.xlu0 %1105
      %1109 = vset.pattern.permute.xlu0 0
      %1110 = vperm.xlu0 %1109, %v856
      %v1111 = vpop.permute.xlu0 %1110
      %1114 = vset.pattern.permute.xlu0 0
      %1115 = vperm.xlu0 %1114, %v857
      %v1116 = vpop.permute.xlu0 %1115
      %1119 = vset.pattern.permute.xlu0 0
      %1120 = vperm.xlu0 %1119, %v858
      %v1121 = vpop.permute.xlu0 %1120
      %1124 = vset.pattern.permute.xlu0 0
      %1125 = vperm.xlu0 %1124, %v859
      %v1126 = vpop.permute.xlu0 %1125
      %1129 = vset.pattern.permute.xlu0 0
      %1130 = vperm.xlu0 %1129, %v860
      %v1131 = vpop.permute.xlu0 %1130
      %1134 = vset.pattern.permute.xlu0 0
      %1135 = vperm.xlu0 %1134, %v861
      %v1136 = vpop.permute.xlu0 %1135
      %1139 = vset.pattern.permute.xlu0 0
      %1140 = vperm.xlu0 %1139, %v862
      %v1141 = vpop.permute.xlu0 %1140
      %1144 = vset.pattern.permute.xlu0 0
      %1145 = vperm.xlu0 %1144, %v863
      %v1146 = vpop.permute.xlu0 %1145
      %1149 = vset.pattern.permute.xlu0 0
      %1150 = vperm.xlu0 %1149, %v864
      %v1151 = vpop.permute.xlu0 %1150
      %v1153 = vmul.f32 %v996, %v961
      %v1154 = vmul.f32 %v1001, %v962
      %v1155 = vmul.f32 %v1006, %v963
      %v1156 = vmul.f32 %v1011, %v964
      %v1157 = vmul.f32 %v1016, %v965
      %v1158 = vmul.f32 %v1021, %v966
      %v1159 = vmul.f32 %v1026, %v967
      %v1160 = vmul.f32 %v1031, %v968
      %v1161 = vmul.f32 %v1036, %v969
      %v1162 = vmul.f32 %v1041, %v970
      %v1163 = vmul.f32 %v1046, %v971
      %v1164 = vmul.f32 %v1051, %v972
      %v1165 = vmul.f32 %v1056, %v973
      %v1166 = vmul.f32 %v1061, %v974
      %v1167 = vmul.f32 %v1066, %v975
      %v1168 = vmul.f32 %v1071, %v976
      %v1169 = vmul.f32 %v1076, %v977
      %v1170 = vmul.f32 %v1081, %v978
      %v1171 = vmul.f32 %v1086, %v979
      %v1172 = vmul.f32 %v1091, %v980
      %v1173 = vmul.f32 %v1096, %v981
      %v1174 = vmul.f32 %v1101, %v982
      %v1175 = vmul.f32 %v1106, %v983
      %v1176 = vmul.f32 %v1111, %v984
      %v1177 = vmul.f32 %v1116, %v985
      %v1178 = vmul.f32 %v1121, %v986
      %v1179 = vmul.f32 %v1126, %v987
      %v1180 = vmul.f32 %v1131, %v988
      %v1181 = vmul.f32 %v1136, %v989
      %v1182 = vmul.f32 %v1141, %v990
      %v1183 = vmul.f32 %v1146, %v991
      %v1184 = vmul.f32 %v1151, %v992
      %v1185 = vmul.f32 %v1153, 0.45
      %v1186 = vmul.f32 %v1154, 0.45
      %v1187 = vmul.f32 %v1155, 0.45
      %v1188 = vmul.f32 %v1156, 0.45
      %v1189 = vmul.f32 %v1157, 0.45
      %v1190 = vmul.f32 %v1158, 0.45
      %v1191 = vmul.f32 %v1159, 0.45
      %v1192 = vmul.f32 %v1160, 0.45
      %v1193 = vmul.f32 %v1161, 0.45
      %v1194 = vmul.f32 %v1162, 0.45
      %v1195 = vmul.f32 %v1163, 0.45
      %v1196 = vmul.f32 %v1164, 0.45
      %v1197 = vmul.f32 %v1165, 0.45
      %v1198 = vmul.f32 %v1166, 0.45
      %v1199 = vmul.f32 %v1167, 0.45
      %v1200 = vmul.f32 %v1168, 0.45
      %v1201 = vmul.f32 %v1169, 0.45
      %v1202 = vmul.f32 %v1170, 0.45
      %v1203 = vmul.f32 %v1171, 0.45
      %v1204 = vmul.f32 %v1172, 0.45
      %v1205 = vmul.f32 %v1173, 0.45
      %v1206 = vmul.f32 %v1174, 0.45
      %v1207 = vmul.f32 %v1175, 0.45
      %v1208 = vmul.f32 %v1176, 0.45
      %v1209 = vmul.f32 %v1177, 0.45
      %v1210 = vmul.f32 %v1178, 0.45
      %v1211 = vmul.f32 %v1179, 0.45
      %v1212 = vmul.f32 %v1180, 0.45
      %v1213 = vmul.f32 %v1181, 0.45
      %v1214 = vmul.f32 %v1182, 0.45
      %v1215 = vmul.f32 %v1183, 0.45
      %v1216 = vmul.f32 %v1184, 0.45
      %v1217 = vadd.f32 %v929, %v1185
      %v1218 = vadd.f32 %v930, %v1186
      %v1219 = vadd.f32 %v931, %v1187
      %v1220 = vadd.f32 %v932, %v1188
      %v1221 = vadd.f32 %v933, %v1189
      %v1222 = vadd.f32 %v934, %v1190
      %v1223 = vadd.f32 %v935, %v1191
      %v1224 = vadd.f32 %v936, %v1192
      %v1225 = vadd.f32 %v937, %v1193
      %v1226 = vadd.f32 %v938, %v1194
      %v1227 = vadd.f32 %v939, %v1195
      %v1228 = vadd.f32 %v940, %v1196
      %v1229 = vadd.f32 %v941, %v1197
      %v1230 = vadd.f32 %v942, %v1198
      %v1231 = vadd.f32 %v943, %v1199
      %v1232 = vadd.f32 %v944, %v1200
      %v1233 = vadd.f32 %v945, %v1201
      %v1234 = vadd.f32 %v946, %v1202
      %v1235 = vadd.f32 %v947, %v1203
      %v1236 = vadd.f32 %v948, %v1204
      %v1237 = vadd.f32 %v949, %v1205
      %v1238 = vadd.f32 %v950, %v1206
      %v1239 = vadd.f32 %v951, %v1207
      %v1240 = vadd.f32 %v952, %v1208
      %v1241 = vadd.f32 %v953, %v1209
      %v1242 = vadd.f32 %v954, %v1210
      %v1243 = vadd.f32 %v955, %v1211
      %v1244 = vadd.f32 %v956, %v1212
      %v1245 = vadd.f32 %v957, %v1213
      %v1246 = vadd.f32 %v958, %v1214
      %v1247 = vadd.f32 %v959, %v1215
      %v1248 = vadd.f32 %v960, %v1216
      %v1249 = vld [vmem:[#allocation10] sm:$0xff]
      %v1250 = vld [vmem:[#allocation10 + $0x8] sm:$0xff]
      %v1251 = vld [vmem:[#allocation10 + $0x10] sm:$0xff]
      %v1252 = vld [vmem:[#allocation10 + $0x18] sm:$0xff]
      %v1253 = vld [vmem:[#allocation10 + $0x20] sm:$0xff]
      %v1254 = vld [vmem:[#allocation10 + $0x28] sm:$0xff]
      %v1255 = vld [vmem:[#allocation10 + $0x30] sm:$0xff]
      %v1256 = vld [vmem:[#allocation10 + $0x38] sm:$0xff]
      %v1257 = vld [vmem:[#allocation10 + $0x40] sm:$0xff]
      %v1258 = vld [vmem:[#allocation10 + $0x48] sm:$0xff]
      %v1259 = vld [vmem:[#allocation10 + $0x50] sm:$0xff]
      %v1260 = vld [vmem:[#allocation10 + $0x58] sm:$0xff]
      %v1261 = vld [vmem:[#allocation10 + $0x60] sm:$0xff]
      %v1262 = vld [vmem:[#allocation10 + $0x68] sm:$0xff]
      %v1263 = vld [vmem:[#allocation10 + $0x70] sm:$0xff]
      %v1264 = vld [vmem:[#allocation10 + $0x78] sm:$0xff]
      %v1265 = vld [vmem:[#allocation10 + $0x80] sm:$0xff]
      %v1266 = vld [vmem:[#allocation10 + $0x88] sm:$0xff]
      %v1267 = vld [vmem:[#allocation10 + $0x90] sm:$0xff]
      %v1268 = vld [vmem:[#allocation10 + $0x98] sm:$0xff]
      %v1269 = vld [vmem:[#allocation10 + $0xa0] sm:$0xff]
      %v1270 = vld [vmem:[#allocation10 + $0xa8] sm:$0xff]
      %v1271 = vld [vmem:[#allocation10 + $0xb0] sm:$0xff]
      %v1272 = vld [vmem:[#allocation10 + $0xb8] sm:$0xff]
      %v1273 = vld [vmem:[#allocation10 + $0xc0] sm:$0xff]
      %v1274 = vld [vmem:[#allocation10 + $0xc8] sm:$0xff]
      %v1275 = vld [vmem:[#allocation10 + $0xd0] sm:$0xff]
      %v1276 = vld [vmem:[#allocation10 + $0xd8] sm:$0xff]
      %v1277 = vld [vmem:[#allocation10 + $0xe0] sm:$0xff]
      %v1278 = vld [vmem:[#allocation10 + $0xe8] sm:$0xff]
      %v1279 = vld [vmem:[#allocation10 + $0xf0] sm:$0xff]
      %v1280 = vld [vmem:[#allocation10 + $0xf8] sm:$0xff]
      %1282 = vset.pattern.permute.xlu0 0
      %1283 = vperm.xlu0 %1282, %v865
      %v1284 = vpop.permute.xlu0 %1283
      %1287 = vset.pattern.permute.xlu0 0
      %1288 = vperm.xlu0 %1287, %v866
      %v1289 = vpop.permute.xlu0 %1288
      %1292 = vset.pattern.permute.xlu0 0
      %1293 = vperm.xlu0 %1292, %v867
      %v1294 = vpop.permute.xlu0 %1293
      %1297 = vset.pattern.permute.xlu0 0
      %1298 = vperm.xlu0 %1297, %v868
      %v1299 = vpop.permute.xlu0 %1298
      %1302 = vset.pattern.permute.xlu0 0
      %1303 = vperm.xlu0 %1302, %v869
      %v1304 = vpop.permute.xlu0 %1303
      %1307 = vset.pattern.permute.xlu0 0
      %1308 = vperm.xlu0 %1307, %v870
      %v1309 = vpop.permute.xlu0 %1308
      %1312 = vset.pattern.permute.xlu0 0
      %1313 = vperm.xlu0 %1312, %v871
      %v1314 = vpop.permute.xlu0 %1313
      %1317 = vset.pattern.permute.xlu0 0
      %1318 = vperm.xlu0 %1317, %v872
      %v1319 = vpop.permute.xlu0 %1318
      %1322 = vset.pattern.permute.xlu0 0
      %1323 = vperm.xlu0 %1322, %v873
      %v1324 = vpop.permute.xlu0 %1323
      %1327 = vset.pattern.permute.xlu0 0
      %1328 = vperm.xlu0 %1327, %v874
      %v1329 = vpop.permute.xlu0 %1328
      %1332 = vset.pattern.permute.xlu0 0
      %1333 = vperm.xlu0 %1332, %v875
      %v1334 = vpop.permute.xlu0 %1333
      %1337 = vset.pattern.permute.xlu0 0
      %1338 = vperm.xlu0 %1337, %v876
      %v1339 = vpop.permute.xlu0 %1338
      %1342 = vset.pattern.permute.xlu0 0
      %1343 = vperm.xlu0 %1342, %v877
      %v1344 = vpop.permute.xlu0 %1343
      %1347 = vset.pattern.permute.xlu0 0
      %1348 = vperm.xlu0 %1347, %v878
      %v1349 = vpop.permute.xlu0 %1348
      %1352 = vset.pattern.permute.xlu0 0
      %1353 = vperm.xlu0 %1352, %v879
      %v1354 = vpop.permute.xlu0 %1353
      %1357 = vset.pattern.permute.xlu0 0
      %1358 = vperm.xlu0 %1357, %v880
      %v1359 = vpop.permute.xlu0 %1358
      %1362 = vset.pattern.permute.xlu0 0
      %1363 = vperm.xlu0 %1362, %v881
      %v1364 = vpop.permute.xlu0 %1363
      %1367 = vset.pattern.permute.xlu0 0
      %1368 = vperm.xlu0 %1367, %v882
      %v1369 = vpop.permute.xlu0 %1368
      %1372 = vset.pattern.permute.xlu0 0
      %1373 = vperm.xlu0 %1372, %v883
      %v1374 = vpop.permute.xlu0 %1373
      %1377 = vset.pattern.permute.xlu0 0
      %1378 = vperm.xlu0 %1377, %v884
      %v1379 = vpop.permute.xlu0 %1378
      %1382 = vset.pattern.permute.xlu0 0
      %1383 = vperm.xlu0 %1382, %v885
      %v1384 = vpop.permute.xlu0 %1383
      %1387 = vset.pattern.permute.xlu0 0
      %1388 = vperm.xlu0 %1387, %v886
      %v1389 = vpop.permute.xlu0 %1388
      %1392 = vset.pattern.permute.xlu0 0
      %1393 = vperm.xlu0 %1392, %v887
      %v1394 = vpop.permute.xlu0 %1393
      %1397 = vset.pattern.permute.xlu0 0
      %1398 = vperm.xlu0 %1397, %v888
      %v1399 = vpop.permute.xlu0 %1398
      %1402 = vset.pattern.permute.xlu0 0
      %1403 = vperm.xlu0 %1402, %v889
      %v1404 = vpop.permute.xlu0 %1403
      %1407 = vset.pattern.permute.xlu0 0
      %1408 = vperm.xlu0 %1407, %v890
      %v1409 = vpop.permute.xlu0 %1408
      %1412 = vset.pattern.permute.xlu0 0
      %1413 = vperm.xlu0 %1412, %v891
      %v1414 = vpop.permute.xlu0 %1413
      %1417 = vset.pattern.permute.xlu0 0
      %1418 = vperm.xlu0 %1417, %v892
      %v1419 = vpop.permute.xlu0 %1418
      %1422 = vset.pattern.permute.xlu0 0
      %1423 = vperm.xlu0 %1422, %v893
      %v1424 = vpop.permute.xlu0 %1423
      %1427 = vset.pattern.permute.xlu0 0
      %1428 = vperm.xlu0 %1427, %v894
      %v1429 = vpop.permute.xlu0 %1428
      %1432 = vset.pattern.permute.xlu0 0
      %1433 = vperm.xlu0 %1432, %v895
      %v1434 = vpop.permute.xlu0 %1433
      %1437 = vset.pattern.permute.xlu0 0
      %1438 = vperm.xlu0 %1437, %v896
      %v1439 = vpop.permute.xlu0 %1438
      %v1441 = vmul.f32 %v1284, %v1249
      %v1442 = vmul.f32 %v1289, %v1250
      %v1443 = vmul.f32 %v1294, %v1251
      %v1444 = vmul.f32 %v1299, %v1252
      %v1445 = vmul.f32 %v1304, %v1253
      %v1446 = vmul.f32 %v1309, %v1254
      %v1447 = vmul.f32 %v1314, %v1255
      %v1448 = vmul.f32 %v1319, %v1256
      %v1449 = vmul.f32 %v1324, %v1257
      %v1450 = vmul.f32 %v1329, %v1258
      %v1451 = vmul.f32 %v1334, %v1259
      %v1452 = vmul.f32 %v1339, %v1260
      %v1453 = vmul.f32 %v1344, %v1261
      %v1454 = vmul.f32 %v1349, %v1262
      %v1455 = vmul.f32 %v1354, %v1263
      %v1456 = vmul.f32 %v1359, %v1264
      %v1457 = vmul.f32 %v1364, %v1265
      %v1458 = vmul.f32 %v1369, %v1266
      %v1459 = vmul.f32 %v1374, %v1267
      %v1460 = vmul.f32 %v1379, %v1268
      %v1461 = vmul.f32 %v1384, %v1269
      %v1462 = vmul.f32 %v1389, %v1270
      %v1463 = vmul.f32 %v1394, %v1271
      %v1464 = vmul.f32 %v1399, %v1272
      %v1465 = vmul.f32 %v1404, %v1273
      %v1466 = vmul.f32 %v1409, %v1274
      %v1467 = vmul.f32 %v1414, %v1275
      %v1468 = vmul.f32 %v1419, %v1276
      %v1469 = vmul.f32 %v1424, %v1277
      %v1470 = vmul.f32 %v1429, %v1278
      %v1471 = vmul.f32 %v1434, %v1279
      %v1472 = vmul.f32 %v1439, %v1280
      %v1473 = vmul.f32 %v1441, 0.5
      %v1474 = vmul.f32 %v1442, 0.5
      %v1475 = vmul.f32 %v1443, 0.5
      %v1476 = vmul.f32 %v1444, 0.5
      %v1477 = vmul.f32 %v1445, 0.5
      %v1478 = vmul.f32 %v1446, 0.5
      %v1479 = vmul.f32 %v1447, 0.5
      %v1480 = vmul.f32 %v1448, 0.5
      %v1481 = vmul.f32 %v1449, 0.5
      %v1482 = vmul.f32 %v1450, 0.5
      %v1483 = vmul.f32 %v1451, 0.5
      %v1484 = vmul.f32 %v1452, 0.5
      %v1485 = vmul.f32 %v1453, 0.5
      %v1486 = vmul.f32 %v1454, 0.5
      %v1487 = vmul.f32 %v1455, 0.5
      %v1488 = vmul.f32 %v1456, 0.5
      %v1489 = vmul.f32 %v1457, 0.5
      %v1490 = vmul.f32 %v1458, 0.5
      %v1491 = vmul.f32 %v1459, 0.5
      %v1492 = vmul.f32 %v1460, 0.5
      %v1493 = vmul.f32 %v1461, 0.5
      %v1494 = vmul.f32 %v1462, 0.5
      %v1495 = vmul.f32 %v1463, 0.5
      %v1496 = vmul.f32 %v1464, 0.5
      %v1497 = vmul.f32 %v1465, 0.5
      %v1498 = vmul.f32 %v1466, 0.5
      %v1499 = vmul.f32 %v1467, 0.5
      %v1500 = vmul.f32 %v1468, 0.5
      %v1501 = vmul.f32 %v1469, 0.5
      %v1502 = vmul.f32 %v1470, 0.5
      %v1503 = vmul.f32 %v1471, 0.5
      %v1504 = vmul.f32 %v1472, 0.5
      %v1505 = vadd.f32 %v1217, %v1473
      %v1506 = vadd.f32 %v1218, %v1474
      %v1507 = vadd.f32 %v1219, %v1475
      %v1508 = vadd.f32 %v1220, %v1476
      %v1509 = vadd.f32 %v1221, %v1477
      %v1510 = vadd.f32 %v1222, %v1478
      %v1511 = vadd.f32 %v1223, %v1479
      %v1512 = vadd.f32 %v1224, %v1480
      %v1513 = vadd.f32 %v1225, %v1481
      %v1514 = vadd.f32 %v1226, %v1482
      %v1515 = vadd.f32 %v1227, %v1483
      %v1516 = vadd.f32 %v1228, %v1484
      %v1517 = vadd.f32 %v1229, %v1485
      %v1518 = vadd.f32 %v1230, %v1486
      %v1519 = vadd.f32 %v1231, %v1487
      %v1520 = vadd.f32 %v1232, %v1488
      %v1521 = vadd.f32 %v1233, %v1489
      %v1522 = vadd.f32 %v1234, %v1490
      %v1523 = vadd.f32 %v1235, %v1491
      %v1524 = vadd.f32 %v1236, %v1492
      %v1525 = vadd.f32 %v1237, %v1493
      %v1526 = vadd.f32 %v1238, %v1494
      %v1527 = vadd.f32 %v1239, %v1495
      %v1528 = vadd.f32 %v1240, %v1496
      %v1529 = vadd.f32 %v1241, %v1497
      %v1530 = vadd.f32 %v1242, %v1498
      %v1531 = vadd.f32 %v1243, %v1499
      %v1532 = vadd.f32 %v1244, %v1500
      %v1533 = vadd.f32 %v1245, %v1501
      %v1534 = vadd.f32 %v1246, %v1502
      %v1535 = vadd.f32 %v1247, %v1503
      %v1536 = vadd.f32 %v1248, %v1504
      %1537 = vst [vmem:[#allocation11] sm:$0xff] %v1505
      %1538 = vst [vmem:[#allocation11 + $0x8] sm:$0xff] %v1506
      %1539 = vst [vmem:[#allocation11 + $0x10] sm:$0xff] %v1507
      %1540 = vst [vmem:[#allocation11 + $0x18] sm:$0xff] %v1508
      %1541 = vst [vmem:[#allocation11 + $0x20] sm:$0xff] %v1509
      %1542 = vst [vmem:[#allocation11 + $0x28] sm:$0xff] %v1510
      %1543 = vst [vmem:[#allocation11 + $0x30] sm:$0xff] %v1511
      %1544 = vst [vmem:[#allocation11 + $0x38] sm:$0xff] %v1512
      %1545 = vst [vmem:[#allocation11 + $0x40] sm:$0xff] %v1513
      %1546 = vst [vmem:[#allocation11 + $0x48] sm:$0xff] %v1514
      %1547 = vst [vmem:[#allocation11 + $0x50] sm:$0xff] %v1515
      %1548 = vst [vmem:[#allocation11 + $0x58] sm:$0xff] %v1516
      %1549 = vst [vmem:[#allocation11 + $0x60] sm:$0xff] %v1517
      %1550 = vst [vmem:[#allocation11 + $0x68] sm:$0xff] %v1518
      %1551 = vst [vmem:[#allocation11 + $0x70] sm:$0xff] %v1519
      %1552 = vst [vmem:[#allocation11 + $0x78] sm:$0xff] %v1520
      %1553 = vst [vmem:[#allocation11 + $0x80] sm:$0xff] %v1521
      %1554 = vst [vmem:[#allocation11 + $0x88] sm:$0xff] %v1522
      %1555 = vst [vmem:[#allocation11 + $0x90] sm:$0xff] %v1523
      %1556 = vst [vmem:[#allocation11 + $0x98] sm:$0xff] %v1524
      %1557 = vst [vmem:[#allocation11 + $0xa0] sm:$0xff] %v1525
      %1558 = vst [vmem:[#allocation11 + $0xa8] sm:$0xff] %v1526
      %1559 = vst [vmem:[#allocation11 + $0xb0] sm:$0xff] %v1527
      %1560 = vst [vmem:[#allocation11 + $0xb8] sm:$0xff] %v1528
      %1561 = vst [vmem:[#allocation11 + $0xc0] sm:$0xff] %v1529
      %1562 = vst [vmem:[#allocation11 + $0xc8] sm:$0xff] %v1530
      %1563 = vst [vmem:[#allocation11 + $0xd0] sm:$0xff] %v1531
      %1564 = vst [vmem:[#allocation11 + $0xd8] sm:$0xff] %v1532
      %1565 = vst [vmem:[#allocation11 + $0xe0] sm:$0xff] %v1533
      %1566 = vst [vmem:[#allocation11 + $0xe8] sm:$0xff] %v1534
      %1567 = vst [vmem:[#allocation11 + $0xf0] sm:$0xff] %v1535
      %1568 = vst [vmem:[#allocation11 + $0xf8] sm:$0xff] %v1536
    $region45: #{tpu_custom_call.1} parent=1 // pred_fallthru
      _
    // Predicated region
    $region46: #{tpu_custom_call.1} parent=1 // pred_check
      _
    $region47: #{tpu_custom_call.1} parent=1 // pred_check_branch
      %1570 = sbr.rel (0) target = $region49
    $region48: #{tpu_custom_call.1} parent=1 // pred_region
      %s1572 = ssub.s32 4096, 4096
      %1573 = vsyncadd [#allocation7], %s1572
      %s1574 = sshll.u32 [#allocation11], 4
      %s1575 = int_to_ptr.vmem [resolvable:$true] %s1574
      %1580 = dma.vmem_to_hbm [thread:$0]  %s1575, 4096, %s7, [#allocation7], 128, 128, 8
    $region49: #{tpu_custom_call.1} parent=1 // pred_fallthru
      _
    // Predicated region
    $region50: #{tpu_custom_call.1} parent=1 // pred_check
      _
    $region51: #{tpu_custom_call.1} parent=1 // pred_check_branch
      %1582 = sbr.rel (0) target = $region53
    $region52: #{tpu_custom_call.1} parent=1 // pred_region
      %1583 = dma.done [#allocation7], 4096
    $region53: #{tpu_custom_call.1} parent=1 // pred_fallthru
      _
    %1584 = vsyncpa [#allocation6], 1
    %1585 = vsyncpa [#allocation9], 1
    %1586 = vsyncpa [#allocation7], 1

</llo_original>
